<compile_context>
chip_gen: v7x
topology: tpu7x:2x2x1
jax: 0.10.0
libtpu: 0.0.40
codegen_flags: <defaults>
</compile_context>

<pallas_src>
import jax
import jax.numpy as jnp
from jax.experimental import pallas as pl
from jax.experimental.pallas import tpu as pltpu


# ----------------------------- Pallas kernel -----------------------------
def bilstm_fused_kernel(x2d_ref, lens_ref, thresh_ref, win_ref, whh_ref, b_ref,
                        out_ref, gx_ref):
    TB = x2d_ref.shape[0]          # T * B
    B = lens_ref.shape[0]
    T = TB // B
    H2 = out_ref.shape[1]          # 2H (forward | backward packed)

    # Hoisted input projection for all T steps and both directions, bias folded
    # in: one (T*B, 2D) @ (2D, 8H) MXU matmul instead of 2*T tiny ones.
    gx_ref[...] = (
        jnp.dot(x2d_ref[...], win_ref[...], preferred_element_type=jnp.float32)
        + b_ref[...])

    lens = lens_ref[...]           # (B, 1) float32
    whh = whh_ref[...]             # (2H, 8H) block-diagonal recurrent weight

    def step(i, carry):
        h, c, acc = carry          # each (B, 2H), packed [forward | backward]
        row = pl.multiple_of(i * B, B)
        gates = gx_ref[pl.ds(row, B), :] + jnp.dot(
            h, whh, preferred_element_type=jnp.float32)           # (B, 8H)
        i_g = jax.nn.sigmoid(gates[:, 0 * H2:1 * H2])
        f_g = jax.nn.sigmoid(gates[:, 1 * H2:2 * H2])
        g_g = jnp.tanh(gates[:, 2 * H2:3 * H2])
        o_g = jax.nn.sigmoid(gates[:, 3 * H2:4 * H2])
        c_new = f_g * c + i_g * g_g
        h_new = o_g * jnp.tanh(c_new)
        # packed-sequence masking: fwd half valid while i < len[b],
        # bwd half valid while (T-1-i) < len[b]; one vcmp + vselects.
        mask = lens > thresh_ref[i]                               # (B, 2H) bool
        h = jnp.where(mask, h_new, h)
        c = jnp.where(mask, c_new, c)
        acc = jnp.maximum(acc, jnp.where(mask, h_new, 0.0))       # fused max-pool
        return h, c, acc

    h0 = jnp.zeros((B, H2), jnp.float32)
    c0 = jnp.zeros((B, H2), jnp.float32)
    acc0 = jnp.full((B, H2), -jnp.inf, jnp.float32)
    _, _, acc = jax.lax.fori_loop(0, T, step, (h0, c0, acc0), unroll=True)

    out_ref[...] = acc             # single lane-dense (B, 2H) store


# ------------------------- wrapper / weight prep -------------------------
def _interleave_blockdiag(wf_t, wb_t, H):
    """Build a (Kf+Kb, 8H) weight with gate blocks [I|F|G|O], each block
    [fwd H | bwd H]; fwd rows only feed fwd columns and vice versa."""
    Kf, Kb = wf_t.shape[0], wb_t.shape[0]
    dt = wf_t.dtype
    blocks = []
    for k in range(4):
        top = jnp.concatenate(
            [wf_t[:, k * H:(k + 1) * H], jnp.zeros((Kf, H), dt)], axis=1)
        bot = jnp.concatenate(
            [jnp.zeros((Kb, H), dt), wb_t[:, k * H:(k + 1) * H]], axis=1)
        blocks.append(jnp.concatenate([top, bot], axis=0))        # (Kf+Kb, 2H)
    return jnp.concatenate(blocks, axis=1)                        # (Kf+Kb, 8H)


def _interleave_bias(bf, bb, H):
    blocks = [jnp.concatenate([bf[k * H:(k + 1) * H], bb[k * H:(k + 1) * H]])
              for k in range(4)]
    return jnp.concatenate(blocks).reshape(1, 8 * H)


def bilstm_max_pool(sent, sent_len, params):
    """sent: (T, B, D) float32; sent_len: (B,) int32. Returns (B, 2H) float32."""
    T, B, D = sent.shape
    H = params["whh_f"].shape[0] // 4

    # Combined, gate-reordered weights (see kernel design notes above).
    win = _interleave_blockdiag(params["wih_f"].T, params["wih_b"].T, H)  # (2D, 8H)
    whh = _interleave_blockdiag(params["whh_f"].T, params["whh_b"].T, H)  # (2H, 8H)
    b = _interleave_bias(params["bih_f"] + params["bhh_f"],
                         params["bih_b"] + params["bhh_b"], H)            # (1, 8H)

    # Both directions share one input stream: row t*B+b carries [x[t,b] | x[T-1-t,b]].
    x_comb = jnp.concatenate([sent, sent[::-1]], axis=-1).reshape(T * B, 2 * D)

    lens = sent_len.astype(jnp.float32).reshape(B, 1)

    # Per-step validity thresholds: fwd half compares vs t, bwd half vs T-1-t.
    t_idx = jnp.arange(T, dtype=jnp.float32)
    thresh = jnp.concatenate(
        [jnp.broadcast_to(t_idx[:, None], (T, H)),
         jnp.broadcast_to((T - 1 - t_idx)[:, None], (T, H))],
        axis=1).reshape(T, 1, 2 * H)

    vmem = pl.BlockSpec(memory_space=pltpu.MemorySpace.VMEM)
    return pl.pallas_call(
        bilstm_fused_kernel,
        out_shape=jax.ShapeDtypeStruct((B, 2 * H), jnp.float32),
        in_specs=[vmem] * 6,
        out_specs=vmem,
        scratch_shapes=[pltpu.VMEM((T * B, 8 * H), jnp.float32)],
    )(x_comb, lens, thresh, win, whh, b)


# --------- pure-JAX reference (PyTorch packed BiLSTM + max pool) ---------
def _lstm_dir_ref(x, lens, wih, whh, bih, bhh, reverse):
    T, B, D = x.shape
    H = whh.shape[1]
    h = jnp.zeros((B, H), jnp.float32)
    c = jnp.zeros((B, H), jnp.float32)
    outs = [None] * T
    ts = range(T - 1, -1, -1) if reverse else range(T)
    for t in ts:
        gates = x[t] @ wih.T + h @ whh.T + bih + bhh
        i = jax.nn.sigmoid(gates[:, 0 * H:1 * H])
        f = jax.nn.sigmoid(gates[:, 1 * H:2 * H])
        g = jnp.tanh(gates[:, 2 * H:3 * H])
        o = jax.nn.sigmoid(gates[:, 3 * H:4 * H])
        c_new = f * c + i * g
        h_new = o * jnp.tanh(c_new)
        valid = (lens > t)[:, None]
        h = jnp.where(valid, h_new, h)
        c = jnp.where(valid, c_new, c)
        outs[t] = jnp.where(valid, h_new, 0.0)
    return jnp.stack(outs)  # (T, B, H)


def bilstm_ref(sent, sent_len, p):
    fwd = _lstm_dir_ref(sent, sent_len, p["wih_f"], p["whh_f"], p["bih_f"], p["bhh_f"], False)
    bwd = _lstm_dir_ref(sent, sent_len, p["wih_b"], p["whh_b"], p["bih_b"], p["bhh_b"], True)
    out = jnp.concatenate([fwd, bwd], axis=-1)     # (T, B, 2H)
    return jnp.max(out, axis=0)                    # (B, 2H)


if __name__ == "__main__":
    # config: word_emb_dim=32, enc_lstm_dim=32, pool_type='max', bsize=8
    T, B, D, H = 8, 8, 32, 32

    key = jax.random.PRNGKey(0)
    keys = jax.random.split(key, 10)
    scale = 1.0 / jnp.sqrt(H)

    def u(k, shape):
        return jax.random.uniform(k, shape, jnp.float32, -scale, scale)

    params = {
        "wih_f": u(keys[0], (4 * H, D)),
        "whh_f": u(keys[1], (4 * H, H)),
        "bih_f": u(keys[2], (4 * H,)),
        "bhh_f": u(keys[3], (4 * H,)),
        "wih_b": u(keys[4], (4 * H, D)),
        "whh_b": u(keys[5], (4 * H, H)),
        "bih_b": u(keys[6], (4 * H,)),
        "bhh_b": u(keys[7], (4 * H,)),
    }

    sent = jax.random.normal(keys[8], (T, B, D), jnp.float32)
    sent_len = jnp.array([8, 5, 3, 8, 7, 2, 6, 1], jnp.int32)

    emb = bilstm_max_pool(sent, sent_len, params)
    emb = jax.block_until_ready(emb)

    emb_ref = bilstm_ref(sent, sent_len, params)
    assert emb.shape == (B, 2 * H)
    assert jnp.allclose(emb, emb_ref, rtol=1e-4, atol=1e-4), "mismatch vs reference"

    print("KERNEL_OK")
</pallas_src>

<mosaic_0001>
module attributes {stable_mosaic.version = 11 : i64} {
  func.func @bilstm_fused_kernel(%arg0: memref<64x64xf32, #tpu.memory_space<vmem>>, %arg1: memref<8x1xf32, #tpu.memory_space<vmem>>, %arg2: memref<8x1x64xf32, #tpu.memory_space<vmem>>, %arg3: memref<64x256xf32, #tpu.memory_space<vmem>>, %arg4: memref<64x256xf32, #tpu.memory_space<vmem>>, %arg5: memref<1x256xf32, #tpu.memory_space<vmem>>, %arg6: memref<8x64xf32, #tpu.memory_space<vmem>>, %arg7: memref<64x256xf32, #tpu.memory_space<vmem>>) attributes {dimension_semantics = [], scalar_prefetch = 0 : i64, scratch_operands = 1 : i64, tpu.core_type = #tpu.core_type<tc>} {
    %c0 = arith.constant 0 : index
    %c0_0 = arith.constant 0 : index
    %0 = vector.load %arg0[%c0, %c0_0] : memref<64x64xf32, #tpu.memory_space<vmem>>, vector<64x64xf32>
    %c0_1 = arith.constant 0 : index
    %c0_2 = arith.constant 0 : index
    %1 = vector.load %arg3[%c0_1, %c0_2] : memref<64x256xf32, #tpu.memory_space<vmem>>, vector<64x256xf32>
    %cst = arith.constant dense<0.000000e+00> : vector<64x256xf32>
    %2 = tpu.matmul %0, %1, %cst {dimension_numbers = #tpu.dot_dimension_numbers<[1], [0], [0], [1], [0, 0, 1, 1], [], []>} : vector<64x64xf32>, vector<64x256xf32>, vector<64x256xf32> -> vector<64x256xf32>
    %c0_3 = arith.constant 0 : index
    %c0_4 = arith.constant 0 : index
    %3 = vector.load %arg5[%c0_3, %c0_4] : memref<1x256xf32, #tpu.memory_space<vmem>>, vector<1x256xf32>
    %4 = vector.broadcast %3 : vector<1x256xf32> to vector<64x256xf32>
    %5 = arith.addf %2, %4 : vector<64x256xf32>
    %c0_5 = arith.constant 0 : index
    %c0_6 = arith.constant 0 : index
    %6 = vector.load %arg7[%c0_5, %c0_6] : memref<64x256xf32, #tpu.memory_space<vmem>>, vector<64x256xf32>
    tpu.vector_store %arg7[%c0_5, %c0_6], %5 {strides = array<i32>} : memref<64x256xf32, #tpu.memory_space<vmem>>, vector<64x256xf32>,
    %c0_7 = arith.constant 0 : index
    %c0_8 = arith.constant 0 : index
    %7 = vector.load %arg1[%c0_7, %c0_8] : memref<8x1xf32, #tpu.memory_space<vmem>>, vector<8x1xf32>
    %c0_9 = arith.constant 0 : index
    %c0_10 = arith.constant 0 : index
    %8 = vector.load %arg4[%c0_9, %c0_10] : memref<64x256xf32, #tpu.memory_space<vmem>>, vector<64x256xf32>
    %cst_11 = arith.constant 0.000000e+00 : f32
    %9 = vector.broadcast %cst_11 : f32 to vector<8x64xf32>
    %cst_12 = arith.constant 0.000000e+00 : f32
    %10 = vector.broadcast %cst_12 : f32 to vector<8x64xf32>
    %cst_13 = arith.constant 0xFF800000 : f32
    %11 = vector.broadcast %cst_13 : f32 to vector<8x64xf32>
    %c0_i32 = arith.constant 0 : i32
    %c8_i32 = arith.constant 8 : i32
    %12 = arith.muli %c0_i32, %c8_i32 : i32
    %13 = tpu.assume_multiple %12, 8 : i32
    %14 = arith.index_cast %13 : i32 to index
    %c0_14 = arith.constant 0 : index
    %15 = vector.load %arg7[%14, %c0_14] : memref<64x256xf32, #tpu.memory_space<vmem>>, vector<8x256xf32>
    %cst_15 = arith.constant dense<0.000000e+00> : vector<8x256xf32>
    %16 = tpu.matmul %9, %8, %cst_15 {dimension_numbers = #tpu.dot_dimension_numbers<[1], [0], [0], [1], [0, 0, 1, 1], [], []>} : vector<8x64xf32>, vector<64x256xf32>, vector<8x256xf32> -> vector<8x256xf32>
    %17 = arith.addf %15, %16 : vector<8x256xf32>
    %18 = vector.extract_strided_slice %17 {offsets = [0, 0], sizes = [8, 64], strides = [1, 1]} : vector<8x256xf32> to vector<8x64xf32>
    %19 = arith.negf %18 : vector<8x64xf32>
    %20 = math.exp %19 : vector<8x64xf32>
    %cst_16 = arith.constant 1.000000e+00 : f32
    %21 = vector.broadcast %cst_16 : f32 to vector<8x64xf32>
    %22 = arith.addf %21, %20 : vector<8x64xf32>
    %23 = arith.divf %21, %22 : vector<8x64xf32>
    %24 = vector.extract_strided_slice %17 {offsets = [0, 64], sizes = [8, 64], strides = [1, 1]} : vector<8x256xf32> to vector<8x64xf32>
    %25 = arith.negf %24 : vector<8x64xf32>
    %26 = math.exp %25 : vector<8x64xf32>
    %cst_17 = arith.constant 1.000000e+00 : f32
    %27 = vector.broadcast %cst_17 : f32 to vector<8x64xf32>
    %28 = arith.addf %27, %26 : vector<8x64xf32>
    %29 = arith.divf %27, %28 : vector<8x64xf32>
    %30 = vector.extract_strided_slice %17 {offsets = [0, 128], sizes = [8, 64], strides = [1, 1]} : vector<8x256xf32> to vector<8x64xf32>
    %31 = math.tanh %30 : vector<8x64xf32>
    %32 = vector.extract_strided_slice %17 {offsets = [0, 192], sizes = [8, 64], strides = [1, 1]} : vector<8x256xf32> to vector<8x64xf32>
    %33 = arith.negf %32 : vector<8x64xf32>
    %34 = math.exp %33 : vector<8x64xf32>
    %cst_18 = arith.constant 1.000000e+00 : f32
    %35 = vector.broadcast %cst_18 : f32 to vector<8x64xf32>
    %36 = arith.addf %35, %34 : vector<8x64xf32>
    %37 = arith.divf %35, %36 : vector<8x64xf32>
    %38 = arith.mulf %29, %10 : vector<8x64xf32>
    %39 = arith.mulf %23, %31 : vector<8x64xf32>
    %40 = arith.addf %38, %39 : vector<8x64xf32>
    %41 = math.tanh %40 : vector<8x64xf32>
    %42 = arith.mulf %37, %41 : vector<8x64xf32>
    %43 = arith.index_cast %c0_i32 : i32 to index
    %c0_19 = arith.constant 0 : index
    %c0_20 = arith.constant 0 : index
    %44 = vector.load %arg2[%43, %c0_19, %c0_20] : memref<8x1x64xf32, #tpu.memory_space<vmem>>, vector<1x1x64xf32>
    %45 = vector.shape_cast %44 : vector<1x1x64xf32> to vector<1x64xf32>
    %46 = vector.broadcast %7 : vector<8x1xf32> to vector<8x64xf32>
    %47 = vector.broadcast %45 : vector<1x64xf32> to vector<8x64xf32>
    %48 = arith.cmpf ogt, %46, %47 : vector<8x64xf32>
    %49 = arith.select %48, %42, %9 : vector<8x64xi1>, vector<8x64xf32>
    %50 = arith.select %48, %40, %10 : vector<8x64xi1>, vector<8x64xf32>
    %cst_21 = arith.constant 0.000000e+00 : f32
    %51 = vector.broadcast %cst_21 : f32 to vector<8x64xf32>
    %52 = arith.select %48, %42, %51 : vector<8x64xi1>, vector<8x64xf32>
    %53 = arith.maximumf %11, %52 : vector<8x64xf32>
    %c1_i32 = arith.constant 1 : i32
    %c8_i32_22 = arith.constant 8 : i32
    %54 = arith.muli %c1_i32, %c8_i32_22 : i32
    %55 = tpu.assume_multiple %54, 8 : i32
    %56 = arith.index_cast %55 : i32 to index
    %c0_23 = arith.constant 0 : index
    %57 = vector.load %arg7[%56, %c0_23] : memref<64x256xf32, #tpu.memory_space<vmem>>, vector<8x256xf32>
    %cst_24 = arith.constant dense<0.000000e+00> : vector<8x256xf32>
    %58 = tpu.matmul %49, %8, %cst_24 {dimension_numbers = #tpu.dot_dimension_numbers<[1], [0], [0], [1], [0, 0, 1, 1], [], []>} : vector<8x64xf32>, vector<64x256xf32>, vector<8x256xf32> -> vector<8x256xf32>
    %59 = arith.addf %57, %58 : vector<8x256xf32>
    %60 = vector.extract_strided_slice %59 {offsets = [0, 0], sizes = [8, 64], strides = [1, 1]} : vector<8x256xf32> to vector<8x64xf32>
    %61 = arith.negf %60 : vector<8x64xf32>
    %62 = math.exp %61 : vector<8x64xf32>
    %cst_25 = arith.constant 1.000000e+00 : f32
    %63 = vector.broadcast %cst_25 : f32 to vector<8x64xf32>
    %64 = arith.addf %63, %62 : vector<8x64xf32>
    %65 = arith.divf %63, %64 : vector<8x64xf32>
    %66 = vector.extract_strided_slice %59 {offsets = [0, 64], sizes = [8, 64], strides = [1, 1]} : vector<8x256xf32> to vector<8x64xf32>
    %67 = arith.negf %66 : vector<8x64xf32>
    %68 = math.exp %67 : vector<8x64xf32>
    %cst_26 = arith.constant 1.000000e+00 : f32
    %69 = vector.broadcast %cst_26 : f32 to vector<8x64xf32>
    %70 = arith.addf %69, %68 : vector<8x64xf32>
    %71 = arith.divf %69, %70 : vector<8x64xf32>
    %72 = vector.extract_strided_slice %59 {offsets = [0, 128], sizes = [8, 64], strides = [1, 1]} : vector<8x256xf32> to vector<8x64xf32>
    %73 = math.tanh %72 : vector<8x64xf32>
    %74 = vector.extract_strided_slice %59 {offsets = [0, 192], sizes = [8, 64], strides = [1, 1]} : vector<8x256xf32> to vector<8x64xf32>
    %75 = arith.negf %74 : vector<8x64xf32>
    %76 = math.exp %75 : vector<8x64xf32>
    %cst_27 = arith.constant 1.000000e+00 : f32
    %77 = vector.broadcast %cst_27 : f32 to vector<8x64xf32>
    %78 = arith.addf %77, %76 : vector<8x64xf32>
    %79 = arith.divf %77, %78 : vector<8x64xf32>
    %80 = arith.mulf %71, %50 : vector<8x64xf32>
    %81 = arith.mulf %65, %73 : vector<8x64xf32>
    %82 = arith.addf %80, %81 : vector<8x64xf32>
    %83 = math.tanh %82 : vector<8x64xf32>
    %84 = arith.mulf %79, %83 : vector<8x64xf32>
    %85 = arith.index_cast %c1_i32 : i32 to index
    %c0_28 = arith.constant 0 : index
    %c0_29 = arith.constant 0 : index
    %86 = vector.load %arg2[%85, %c0_28, %c0_29] : memref<8x1x64xf32, #tpu.memory_space<vmem>>, vector<1x1x64xf32>
    %87 = vector.shape_cast %86 : vector<1x1x64xf32> to vector<1x64xf32>
    %88 = vector.broadcast %7 : vector<8x1xf32> to vector<8x64xf32>
    %89 = vector.broadcast %87 : vector<1x64xf32> to vector<8x64xf32>
    %90 = arith.cmpf ogt, %88, %89 : vector<8x64xf32>
    %91 = arith.select %90, %84, %49 : vector<8x64xi1>, vector<8x64xf32>
    %92 = arith.select %90, %82, %50 : vector<8x64xi1>, vector<8x64xf32>
    %cst_30 = arith.constant 0.000000e+00 : f32
    %93 = vector.broadcast %cst_30 : f32 to vector<8x64xf32>
    %94 = arith.select %90, %84, %93 : vector<8x64xi1>, vector<8x64xf32>
    %95 = arith.maximumf %53, %94 : vector<8x64xf32>
    %c2_i32 = arith.constant 2 : i32
    %c8_i32_31 = arith.constant 8 : i32
    %96 = arith.muli %c2_i32, %c8_i32_31 : i32
    %97 = tpu.assume_multiple %96, 8 : i32
    %98 = arith.index_cast %97 : i32 to index
    %c0_32 = arith.constant 0 : index
    %99 = vector.load %arg7[%98, %c0_32] : memref<64x256xf32, #tpu.memory_space<vmem>>, vector<8x256xf32>
    %cst_33 = arith.constant dense<0.000000e+00> : vector<8x256xf32>
    %100 = tpu.matmul %91, %8, %cst_33 {dimension_numbers = #tpu.dot_dimension_numbers<[1], [0], [0], [1], [0, 0, 1, 1], [], []>} : vector<8x64xf32>, vector<64x256xf32>, vector<8x256xf32> -> vector<8x256xf32>
    %101 = arith.addf %99, %100 : vector<8x256xf32>
    %102 = vector.extract_strided_slice %101 {offsets = [0, 0], sizes = [8, 64], strides = [1, 1]} : vector<8x256xf32> to vector<8x64xf32>
    %103 = arith.negf %102 : vector<8x64xf32>
    %104 = math.exp %103 : vector<8x64xf32>
    %cst_34 = arith.constant 1.000000e+00 : f32
    %105 = vector.broadcast %cst_34 : f32 to vector<8x64xf32>
    %106 = arith.addf %105, %104 : vector<8x64xf32>
    %107 = arith.divf %105, %106 : vector<8x64xf32>
    %108 = vector.extract_strided_slice %101 {offsets = [0, 64], sizes = [8, 64], strides = [1, 1]} : vector<8x256xf32> to vector<8x64xf32>
    %109 = arith.negf %108 : vector<8x64xf32>
    %110 = math.exp %109 : vector<8x64xf32>
    %cst_35 = arith.constant 1.000000e+00 : f32
    %111 = vector.broadcast %cst_35 : f32 to vector<8x64xf32>
    %112 = arith.addf %111, %110 : vector<8x64xf32>
    %113 = arith.divf %111, %112 : vector<8x64xf32>
    %114 = vector.extract_strided_slice %101 {offsets = [0, 128], sizes = [8, 64], strides = [1, 1]} : vector<8x256xf32> to vector<8x64xf32>
    %115 = math.tanh %114 : vector<8x64xf32>
    %116 = vector.extract_strided_slice %101 {offsets = [0, 192], sizes = [8, 64], strides = [1, 1]} : vector<8x256xf32> to vector<8x64xf32>
    %117 = arith.negf %116 : vector<8x64xf32>
    %118 = math.exp %117 : vector<8x64xf32>
    %cst_36 = arith.constant 1.000000e+00 : f32
    %119 = vector.broadcast %cst_36 : f32 to vector<8x64xf32>
    %120 = arith.addf %119, %118 : vector<8x64xf32>
    %121 = arith.divf %119, %120 : vector<8x64xf32>
    %122 = arith.mulf %113, %92 : vector<8x64xf32>
    %123 = arith.mulf %107, %115 : vector<8x64xf32>
    %124 = arith.addf %122, %123 : vector<8x64xf32>
    %125 = math.tanh %124 : vector<8x64xf32>
    %126 = arith.mulf %121, %125 : vector<8x64xf32>
    %127 = arith.index_cast %c2_i32 : i32 to index
    %c0_37 = arith.constant 0 : index
    %c0_38 = arith.constant 0 : index
    %128 = vector.load %arg2[%127, %c0_37, %c0_38] : memref<8x1x64xf32, #tpu.memory_space<vmem>>, vector<1x1x64xf32>
    %129 = vector.shape_cast %128 : vector<1x1x64xf32> to vector<1x64xf32>
    %130 = vector.broadcast %7 : vector<8x1xf32> to vector<8x64xf32>
    %131 = vector.broadcast %129 : vector<1x64xf32> to vector<8x64xf32>
    %132 = arith.cmpf ogt, %130, %131 : vector<8x64xf32>
    %133 = arith.select %132, %126, %91 : vector<8x64xi1>, vector<8x64xf32>
    %134 = arith.select %132, %124, %92 : vector<8x64xi1>, vector<8x64xf32>
    %cst_39 = arith.constant 0.000000e+00 : f32
    %135 = vector.broadcast %cst_39 : f32 to vector<8x64xf32>
    %136 = arith.select %132, %126, %135 : vector<8x64xi1>, vector<8x64xf32>
    %137 = arith.maximumf %95, %136 : vector<8x64xf32>
    %c3_i32 = arith.constant 3 : i32
    %c8_i32_40 = arith.constant 8 : i32
    %138 = arith.muli %c3_i32, %c8_i32_40 : i32
    %139 = tpu.assume_multiple %138, 8 : i32
    %140 = arith.index_cast %139 : i32 to index
    %c0_41 = arith.constant 0 : index
    %141 = vector.load %arg7[%140, %c0_41] : memref<64x256xf32, #tpu.memory_space<vmem>>, vector<8x256xf32>
    %cst_42 = arith.constant dense<0.000000e+00> : vector<8x256xf32>
    %142 = tpu.matmul %133, %8, %cst_42 {dimension_numbers = #tpu.dot_dimension_numbers<[1], [0], [0], [1], [0, 0, 1, 1], [], []>} : vector<8x64xf32>, vector<64x256xf32>, vector<8x256xf32> -> vector<8x256xf32>
    %143 = arith.addf %141, %142 : vector<8x256xf32>
    %144 = vector.extract_strided_slice %143 {offsets = [0, 0], sizes = [8, 64], strides = [1, 1]} : vector<8x256xf32> to vector<8x64xf32>
    %145 = arith.negf %144 : vector<8x64xf32>
    %146 = math.exp %145 : vector<8x64xf32>
    %cst_43 = arith.constant 1.000000e+00 : f32
    %147 = vector.broadcast %cst_43 : f32 to vector<8x64xf32>
    %148 = arith.addf %147, %146 : vector<8x64xf32>
    %149 = arith.divf %147, %148 : vector<8x64xf32>
    %150 = vector.extract_strided_slice %143 {offsets = [0, 64], sizes = [8, 64], strides = [1, 1]} : vector<8x256xf32> to vector<8x64xf32>
    %151 = arith.negf %150 : vector<8x64xf32>
    %152 = math.exp %151 : vector<8x64xf32>
    %cst_44 = arith.constant 1.000000e+00 : f32
    %153 = vector.broadcast %cst_44 : f32 to vector<8x64xf32>
    %154 = arith.addf %153, %152 : vector<8x64xf32>
    %155 = arith.divf %153, %154 : vector<8x64xf32>
    %156 = vector.extract_strided_slice %143 {offsets = [0, 128], sizes = [8, 64], strides = [1, 1]} : vector<8x256xf32> to vector<8x64xf32>
    %157 = math.tanh %156 : vector<8x64xf32>
    %158 = vector.extract_strided_slice %143 {offsets = [0, 192], sizes = [8, 64], strides = [1, 1]} : vector<8x256xf32> to vector<8x64xf32>
    %159 = arith.negf %158 : vector<8x64xf32>
    %160 = math.exp %159 : vector<8x64xf32>
    %cst_45 = arith.constant 1.000000e+00 : f32
    %161 = vector.broadcast %cst_45 : f32 to vector<8x64xf32>
    %162 = arith.addf %161, %160 : vector<8x64xf32>
    %163 = arith.divf %161, %162 : vector<8x64xf32>
    %164 = arith.mulf %155, %134 : vector<8x64xf32>
    %165 = arith.mulf %149, %157 : vector<8x64xf32>
    %166 = arith.addf %164, %165 : vector<8x64xf32>
    %167 = math.tanh %166 : vector<8x64xf32>
    %168 = arith.mulf %163, %167 : vector<8x64xf32>
    %169 = arith.index_cast %c3_i32 : i32 to index
    %c0_46 = arith.constant 0 : index
    %c0_47 = arith.constant 0 : index
    %170 = vector.load %arg2[%169, %c0_46, %c0_47] : memref<8x1x64xf32, #tpu.memory_space<vmem>>, vector<1x1x64xf32>
    %171 = vector.shape_cast %170 : vector<1x1x64xf32> to vector<1x64xf32>
    %172 = vector.broadcast %7 : vector<8x1xf32> to vector<8x64xf32>
    %173 = vector.broadcast %171 : vector<1x64xf32> to vector<8x64xf32>
    %174 = arith.cmpf ogt, %172, %173 : vector<8x64xf32>
    %175 = arith.select %174, %168, %133 : vector<8x64xi1>, vector<8x64xf32>
    %176 = arith.select %174, %166, %134 : vector<8x64xi1>, vector<8x64xf32>
    %cst_48 = arith.constant 0.000000e+00 : f32
    %177 = vector.broadcast %cst_48 : f32 to vector<8x64xf32>
    %178 = arith.select %174, %168, %177 : vector<8x64xi1>, vector<8x64xf32>
    %179 = arith.maximumf %137, %178 : vector<8x64xf32>
    %c4_i32 = arith.constant 4 : i32
    %c8_i32_49 = arith.constant 8 : i32
    %180 = arith.muli %c4_i32, %c8_i32_49 : i32
    %181 = tpu.assume_multiple %180, 8 : i32
    %182 = arith.index_cast %181 : i32 to index
    %c0_50 = arith.constant 0 : index
    %183 = vector.load %arg7[%182, %c0_50] : memref<64x256xf32, #tpu.memory_space<vmem>>, vector<8x256xf32>
    %cst_51 = arith.constant dense<0.000000e+00> : vector<8x256xf32>
    %184 = tpu.matmul %175, %8, %cst_51 {dimension_numbers = #tpu.dot_dimension_numbers<[1], [0], [0], [1], [0, 0, 1, 1], [], []>} : vector<8x64xf32>, vector<64x256xf32>, vector<8x256xf32> -> vector<8x256xf32>
    %185 = arith.addf %183, %184 : vector<8x256xf32>
    %186 = vector.extract_strided_slice %185 {offsets = [0, 0], sizes = [8, 64], strides = [1, 1]} : vector<8x256xf32> to vector<8x64xf32>
    %187 = arith.negf %186 : vector<8x64xf32>
    %188 = math.exp %187 : vector<8x64xf32>
    %cst_52 = arith.constant 1.000000e+00 : f32
    %189 = vector.broadcast %cst_52 : f32 to vector<8x64xf32>
    %190 = arith.addf %189, %188 : vector<8x64xf32>
    %191 = arith.divf %189, %190 : vector<8x64xf32>
    %192 = vector.extract_strided_slice %185 {offsets = [0, 64], sizes = [8, 64], strides = [1, 1]} : vector<8x256xf32> to vector<8x64xf32>
    %193 = arith.negf %192 : vector<8x64xf32>
    %194 = math.exp %193 : vector<8x64xf32>
    %cst_53 = arith.constant 1.000000e+00 : f32
    %195 = vector.broadcast %cst_53 : f32 to vector<8x64xf32>
    %196 = arith.addf %195, %194 : vector<8x64xf32>
    %197 = arith.divf %195, %196 : vector<8x64xf32>
    %198 = vector.extract_strided_slice %185 {offsets = [0, 128], sizes = [8, 64], strides = [1, 1]} : vector<8x256xf32> to vector<8x64xf32>
    %199 = math.tanh %198 : vector<8x64xf32>
    %200 = vector.extract_strided_slice %185 {offsets = [0, 192], sizes = [8, 64], strides = [1, 1]} : vector<8x256xf32> to vector<8x64xf32>
    %201 = arith.negf %200 : vector<8x64xf32>
    %202 = math.exp %201 : vector<8x64xf32>
    %cst_54 = arith.constant 1.000000e+00 : f32
    %203 = vector.broadcast %cst_54 : f32 to vector<8x64xf32>
    %204 = arith.addf %203, %202 : vector<8x64xf32>
    %205 = arith.divf %203, %204 : vector<8x64xf32>
    %206 = arith.mulf %197, %176 : vector<8x64xf32>
    %207 = arith.mulf %191, %199 : vector<8x64xf32>
    %208 = arith.addf %206, %207 : vector<8x64xf32>
    %209 = math.tanh %208 : vector<8x64xf32>
    %210 = arith.mulf %205, %209 : vector<8x64xf32>
    %211 = arith.index_cast %c4_i32 : i32 to index
    %c0_55 = arith.constant 0 : index
    %c0_56 = arith.constant 0 : index
    %212 = vector.load %arg2[%211, %c0_55, %c0_56] : memref<8x1x64xf32, #tpu.memory_space<vmem>>, vector<1x1x64xf32>
    %213 = vector.shape_cast %212 : vector<1x1x64xf32> to vector<1x64xf32>
    %214 = vector.broadcast %7 : vector<8x1xf32> to vector<8x64xf32>
    %215 = vector.broadcast %213 : vector<1x64xf32> to vector<8x64xf32>
    %216 = arith.cmpf ogt, %214, %215 : vector<8x64xf32>
    %217 = arith.select %216, %210, %175 : vector<8x64xi1>, vector<8x64xf32>
    %218 = arith.select %216, %208, %176 : vector<8x64xi1>, vector<8x64xf32>
    %cst_57 = arith.constant 0.000000e+00 : f32
    %219 = vector.broadcast %cst_57 : f32 to vector<8x64xf32>
    %220 = arith.select %216, %210, %219 : vector<8x64xi1>, vector<8x64xf32>
    %221 = arith.maximumf %179, %220 : vector<8x64xf32>
    %c5_i32 = arith.constant 5 : i32
    %c8_i32_58 = arith.constant 8 : i32
    %222 = arith.muli %c5_i32, %c8_i32_58 : i32
    %223 = tpu.assume_multiple %222, 8 : i32
    %224 = arith.index_cast %223 : i32 to index
    %c0_59 = arith.constant 0 : index
    %225 = vector.load %arg7[%224, %c0_59] : memref<64x256xf32, #tpu.memory_space<vmem>>, vector<8x256xf32>
    %cst_60 = arith.constant dense<0.000000e+00> : vector<8x256xf32>
    %226 = tpu.matmul %217, %8, %cst_60 {dimension_numbers = #tpu.dot_dimension_numbers<[1], [0], [0], [1], [0, 0, 1, 1], [], []>} : vector<8x64xf32>, vector<64x256xf32>, vector<8x256xf32> -> vector<8x256xf32>
    %227 = arith.addf %225, %226 : vector<8x256xf32>
    %228 = vector.extract_strided_slice %227 {offsets = [0, 0], sizes = [8, 64], strides = [1, 1]} : vector<8x256xf32> to vector<8x64xf32>
    %229 = arith.negf %228 : vector<8x64xf32>
    %230 = math.exp %229 : vector<8x64xf32>
    %cst_61 = arith.constant 1.000000e+00 : f32
    %231 = vector.broadcast %cst_61 : f32 to vector<8x64xf32>
    %232 = arith.addf %231, %230 : vector<8x64xf32>
    %233 = arith.divf %231, %232 : vector<8x64xf32>
    %234 = vector.extract_strided_slice %227 {offsets = [0, 64], sizes = [8, 64], strides = [1, 1]} : vector<8x256xf32> to vector<8x64xf32>
    %235 = arith.negf %234 : vector<8x64xf32>
    %236 = math.exp %235 : vector<8x64xf32>
    %cst_62 = arith.constant 1.000000e+00 : f32
    %237 = vector.broadcast %cst_62 : f32 to vector<8x64xf32>
    %238 = arith.addf %237, %236 : vector<8x64xf32>
    %239 = arith.divf %237, %238 : vector<8x64xf32>
    %240 = vector.extract_strided_slice %227 {offsets = [0, 128], sizes = [8, 64], strides = [1, 1]} : vector<8x256xf32> to vector<8x64xf32>
    %241 = math.tanh %240 : vector<8x64xf32>
    %242 = vector.extract_strided_slice %227 {offsets = [0, 192], sizes = [8, 64], strides = [1, 1]} : vector<8x256xf32> to vector<8x64xf32>
    %243 = arith.negf %242 : vector<8x64xf32>
    %244 = math.exp %243 : vector<8x64xf32>
    %cst_63 = arith.constant 1.000000e+00 : f32
    %245 = vector.broadcast %cst_63 : f32 to vector<8x64xf32>
    %246 = arith.addf %245, %244 : vector<8x64xf32>
    %247 = arith.divf %245, %246 : vector<8x64xf32>
    %248 = arith.mulf %239, %218 : vector<8x64xf32>
    %249 = arith.mulf %233, %241 : vector<8x64xf32>
    %250 = arith.addf %248, %249 : vector<8x64xf32>
    %251 = math.tanh %250 : vector<8x64xf32>
    %252 = arith.mulf %247, %251 : vector<8x64xf32>
    %253 = arith.index_cast %c5_i32 : i32 to index
    %c0_64 = arith.constant 0 : index
    %c0_65 = arith.constant 0 : index
    %254 = vector.load %arg2[%253, %c0_64, %c0_65] : memref<8x1x64xf32, #tpu.memory_space<vmem>>, vector<1x1x64xf32>
    %255 = vector.shape_cast %254 : vector<1x1x64xf32> to vector<1x64xf32>
    %256 = vector.broadcast %7 : vector<8x1xf32> to vector<8x64xf32>
    %257 = vector.broadcast %255 : vector<1x64xf32> to vector<8x64xf32>
    %258 = arith.cmpf ogt, %256, %257 : vector<8x64xf32>
    %259 = arith.select %258, %252, %217 : vector<8x64xi1>, vector<8x64xf32>
    %260 = arith.select %258, %250, %218 : vector<8x64xi1>, vector<8x64xf32>
    %cst_66 = arith.constant 0.000000e+00 : f32
    %261 = vector.broadcast %cst_66 : f32 to vector<8x64xf32>
    %262 = arith.select %258, %252, %261 : vector<8x64xi1>, vector<8x64xf32>
    %263 = arith.maximumf %221, %262 : vector<8x64xf32>
    %c6_i32 = arith.constant 6 : i32
    %c8_i32_67 = arith.constant 8 : i32
    %264 = arith.muli %c6_i32, %c8_i32_67 : i32
    %265 = tpu.assume_multiple %264, 8 : i32
    %266 = arith.index_cast %265 : i32 to index
    %c0_68 = arith.constant 0 : index
    %267 = vector.load %arg7[%266, %c0_68] : memref<64x256xf32, #tpu.memory_space<vmem>>, vector<8x256xf32>
    %cst_69 = arith.constant dense<0.000000e+00> : vector<8x256xf32>
    %268 = tpu.matmul %259, %8, %cst_69 {dimension_numbers = #tpu.dot_dimension_numbers<[1], [0], [0], [1], [0, 0, 1, 1], [], []>} : vector<8x64xf32>, vector<64x256xf32>, vector<8x256xf32> -> vector<8x256xf32>
    %269 = arith.addf %267, %268 : vector<8x256xf32>
    %270 = vector.extract_strided_slice %269 {offsets = [0, 0], sizes = [8, 64], strides = [1, 1]} : vector<8x256xf32> to vector<8x64xf32>
    %271 = arith.negf %270 : vector<8x64xf32>
    %272 = math.exp %271 : vector<8x64xf32>
    %cst_70 = arith.constant 1.000000e+00 : f32
    %273 = vector.broadcast %cst_70 : f32 to vector<8x64xf32>
    %274 = arith.addf %273, %272 : vector<8x64xf32>
    %275 = arith.divf %273, %274 : vector<8x64xf32>
    %276 = vector.extract_strided_slice %269 {offsets = [0, 64], sizes = [8, 64], strides = [1, 1]} : vector<8x256xf32> to vector<8x64xf32>
    %277 = arith.negf %276 : vector<8x64xf32>
    %278 = math.exp %277 : vector<8x64xf32>
    %cst_71 = arith.constant 1.000000e+00 : f32
    %279 = vector.broadcast %cst_71 : f32 to vector<8x64xf32>
    %280 = arith.addf %279, %278 : vector<8x64xf32>
    %281 = arith.divf %279, %280 : vector<8x64xf32>
    %282 = vector.extract_strided_slice %269 {offsets = [0, 128], sizes = [8, 64], strides = [1, 1]} : vector<8x256xf32> to vector<8x64xf32>
    %283 = math.tanh %282 : vector<8x64xf32>
    %284 = vector.extract_strided_slice %269 {offsets = [0, 192], sizes = [8, 64], strides = [1, 1]} : vector<8x256xf32> to vector<8x64xf32>
    %285 = arith.negf %284 : vector<8x64xf32>
    %286 = math.exp %285 : vector<8x64xf32>
    %cst_72 = arith.constant 1.000000e+00 : f32
    %287 = vector.broadcast %cst_72 : f32 to vector<8x64xf32>
    %288 = arith.addf %287, %286 : vector<8x64xf32>
    %289 = arith.divf %287, %288 : vector<8x64xf32>
    %290 = arith.mulf %281, %260 : vector<8x64xf32>
    %291 = arith.mulf %275, %283 : vector<8x64xf32>
    %292 = arith.addf %290, %291 : vector<8x64xf32>
    %293 = math.tanh %292 : vector<8x64xf32>
    %294 = arith.mulf %289, %293 : vector<8x64xf32>
    %295 = arith.index_cast %c6_i32 : i32 to index
    %c0_73 = arith.constant 0 : index
    %c0_74 = arith.constant 0 : index
    %296 = vector.load %arg2[%295, %c0_73, %c0_74] : memref<8x1x64xf32, #tpu.memory_space<vmem>>, vector<1x1x64xf32>
    %297 = vector.shape_cast %296 : vector<1x1x64xf32> to vector<1x64xf32>
    %298 = vector.broadcast %7 : vector<8x1xf32> to vector<8x64xf32>
    %299 = vector.broadcast %297 : vector<1x64xf32> to vector<8x64xf32>
    %300 = arith.cmpf ogt, %298, %299 : vector<8x64xf32>
    %301 = arith.select %300, %294, %259 : vector<8x64xi1>, vector<8x64xf32>
    %302 = arith.select %300, %292, %260 : vector<8x64xi1>, vector<8x64xf32>
    %cst_75 = arith.constant 0.000000e+00 : f32
    %303 = vector.broadcast %cst_75 : f32 to vector<8x64xf32>
    %304 = arith.select %300, %294, %303 : vector<8x64xi1>, vector<8x64xf32>
    %305 = arith.maximumf %263, %304 : vector<8x64xf32>
    %c7_i32 = arith.constant 7 : i32
    %c8_i32_76 = arith.constant 8 : i32
    %306 = arith.muli %c7_i32, %c8_i32_76 : i32
    %307 = tpu.assume_multiple %306, 8 : i32
    %308 = arith.index_cast %307 : i32 to index
    %c0_77 = arith.constant 0 : index
    %309 = vector.load %arg7[%308, %c0_77] : memref<64x256xf32, #tpu.memory_space<vmem>>, vector<8x256xf32>
    %cst_78 = arith.constant dense<0.000000e+00> : vector<8x256xf32>
    %310 = tpu.matmul %301, %8, %cst_78 {dimension_numbers = #tpu.dot_dimension_numbers<[1], [0], [0], [1], [0, 0, 1, 1], [], []>} : vector<8x64xf32>, vector<64x256xf32>, vector<8x256xf32> -> vector<8x256xf32>
    %311 = arith.addf %309, %310 : vector<8x256xf32>
    %312 = vector.extract_strided_slice %311 {offsets = [0, 0], sizes = [8, 64], strides = [1, 1]} : vector<8x256xf32> to vector<8x64xf32>
    %313 = arith.negf %312 : vector<8x64xf32>
    %314 = math.exp %313 : vector<8x64xf32>
    %cst_79 = arith.constant 1.000000e+00 : f32
    %315 = vector.broadcast %cst_79 : f32 to vector<8x64xf32>
    %316 = arith.addf %315, %314 : vector<8x64xf32>
    %317 = arith.divf %315, %316 : vector<8x64xf32>
    %318 = vector.extract_strided_slice %311 {offsets = [0, 64], sizes = [8, 64], strides = [1, 1]} : vector<8x256xf32> to vector<8x64xf32>
    %319 = arith.negf %318 : vector<8x64xf32>
    %320 = math.exp %319 : vector<8x64xf32>
    %cst_80 = arith.constant 1.000000e+00 : f32
    %321 = vector.broadcast %cst_80 : f32 to vector<8x64xf32>
    %322 = arith.addf %321, %320 : vector<8x64xf32>
    %323 = arith.divf %321, %322 : vector<8x64xf32>
    %324 = vector.extract_strided_slice %311 {offsets = [0, 128], sizes = [8, 64], strides = [1, 1]} : vector<8x256xf32> to vector<8x64xf32>
    %325 = math.tanh %324 : vector<8x64xf32>
    %326 = vector.extract_strided_slice %311 {offsets = [0, 192], sizes = [8, 64], strides = [1, 1]} : vector<8x256xf32> to vector<8x64xf32>
    %327 = arith.negf %326 : vector<8x64xf32>
    %328 = math.exp %327 : vector<8x64xf32>
    %cst_81 = arith.constant 1.000000e+00 : f32
    %329 = vector.broadcast %cst_81 : f32 to vector<8x64xf32>
    %330 = arith.addf %329, %328 : vector<8x64xf32>
    %331 = arith.divf %329, %330 : vector<8x64xf32>
    %332 = arith.mulf %323, %302 : vector<8x64xf32>
    %333 = arith.mulf %317, %325 : vector<8x64xf32>
    %334 = arith.addf %332, %333 : vector<8x64xf32>
    %335 = math.tanh %334 : vector<8x64xf32>
    %336 = arith.mulf %331, %335 : vector<8x64xf32>
    %337 = arith.index_cast %c7_i32 : i32 to index
    %c0_82 = arith.constant 0 : index
    %c0_83 = arith.constant 0 : index
    %338 = vector.load %arg2[%337, %c0_82, %c0_83] : memref<8x1x64xf32, #tpu.memory_space<vmem>>, vector<1x1x64xf32>
    %339 = vector.shape_cast %338 : vector<1x1x64xf32> to vector<1x64xf32>
    %340 = vector.broadcast %7 : vector<8x1xf32> to vector<8x64xf32>
    %341 = vector.broadcast %339 : vector<1x64xf32> to vector<8x64xf32>
    %342 = arith.cmpf ogt, %340, %341 : vector<8x64xf32>
    %343 = arith.select %342, %336, %301 : vector<8x64xi1>, vector<8x64xf32>
    %344 = arith.select %342, %334, %302 : vector<8x64xi1>, vector<8x64xf32>
    %cst_84 = arith.constant 0.000000e+00 : f32
    %345 = vector.broadcast %cst_84 : f32 to vector<8x64xf32>
    %346 = arith.select %342, %336, %345 : vector<8x64xi1>, vector<8x64xf32>
    %347 = arith.maximumf %305, %346 : vector<8x64xf32>
    %c8_i32_85 = arith.constant 8 : i32
    %c0_86 = arith.constant 0 : index
    %c0_87 = arith.constant 0 : index
    %348 = vector.load %arg6[%c0_86, %c0_87] : memref<8x64xf32, #tpu.memory_space<vmem>>, vector<8x64xf32>
    tpu.vector_store %arg6[%c0_86, %c0_87], %347 {strides = array<i32>} : memref<8x64xf32, #tpu.memory_space<vmem>>, vector<8x64xf32>,
    return
  }
}

</mosaic_0001>

<llo_original>
// kernel: tpu_custom_call.1
$region0: #{tpu_custom_call.1}
  #allocation0 [shape = 'u32[]', space=smem, size = 0x4, offset = 0x4, fixed_abs, tag = 'smem constant byte address 0x4 - core index']
  #allocation1 [shape = 'u32[144,128]{1,0:T(1,128)}', space=vmem, size = 0x12000, scoped, tag = 'internal scratch']
  #allocation2 [shape = 'f32[64,256]{1,0:T(8,128)}', space=vmem, size = 0x10000, scoped, tag = 'scratch operand']
  %s0 = inlined_call_operand.hbm [shape: f32[64,64], index: 0, kind: input, shape index: {}]
  %s1 = inlined_call_operand.vmem [shape: f32[8,1], index: 1, kind: input, shape index: {}]
  %s2 = inlined_call_operand.vmem [shape: f32[8,1,64], index: 2, kind: input, shape index: {}]
  %s3 = inlined_call_operand.hbm [shape: f32[64,256], index: 3, kind: input, shape index: {}]
  %s4 = inlined_call_operand.hbm [shape: f32[64,256], index: 4, kind: input, shape index: {}]
  %s5 = inlined_call_operand.vmem [shape: f32[1,256], index: 5, kind: input, shape index: {}]
  %s6 = inlined_call_operand.hbm [shape: f32[8,64], index: 6, kind: output, shape index: {}]
  %s7 = sld [smem:[#allocation0]]
  $region46: #{tpu_custom_call.1} parent=0
    _
  %s9 = ssub.s32 1, %s7
  %s10 = scalar_select 0, %s9, %s7
  $region1: #{tpu_custom_call.1} parent=0
    #allocation3 [shape = 'u8[32768]{0}', space=vmem, size = 0x8000, scoped, tag = 'input window, operand 0, single buffered']
    #allocation4 [shape = 's32[1]{0}', space=sflag, size = 0x4, scoped, tag = 'scoped memory for tpu_custom_call.1']
    #allocation5 [shape = 's32[1]{0}', space=sflag, size = 0x4, scoped, tag = 'scoped memory for tpu_custom_call.1']
    #allocation6 [shape = 'u8[65536]{0}', space=vmem, size = 0x10000, scoped, tag = 'input window, operand 3, single buffered']
    #allocation7 [shape = 's32[1]{0}', space=sflag, size = 0x4, scoped, tag = 'scoped memory for tpu_custom_call.1']
    #allocation8 [shape = 'u8[65536]{0}', space=vmem, size = 0x10000, scoped, tag = 'input window, operand 4, single buffered']
    #allocation9 [shape = 'u8[4096]{0}', space=vmem, size = 0x1000, scoped, tag = 'output window, operand 0, single buffered']
    %11 = vsyncpa [#allocation4], 0
    %12 = vsyncpa [#allocation7], 0
    %13 = vsyncpa [#allocation5], 0
    // Predicated region
    $region2: #{tpu_custom_call.1} parent=1 // pred_check
      _
    $region3: #{tpu_custom_call.1} parent=1 // pred_check_branch
      %15 = sbr.rel (0) target = $region5
    $region4: #{tpu_custom_call.1} parent=1 // pred_region
      %s17 = ssub.s32 1024, 1024
      %18 = vsyncadd [#allocation4], %s17
      %s19 = sshll.u32 [#allocation3], 4
      %s20 = int_to_ptr.vmem [resolvable:$true] %s19
      %25 = dma.hbm_to_vmem [thread:$0]  %s0, 1024, %s20, [#allocation4], 128, 128, 8
    $region5: #{tpu_custom_call.1} parent=1 // pred_fallthru
      _
    // Predicated region
    $region6: #{tpu_custom_call.1} parent=1 // pred_check
      _
    $region7: #{tpu_custom_call.1} parent=1 // pred_check_branch
      %27 = sbr.rel (0) target = $region9
    $region8: #{tpu_custom_call.1} parent=1 // pred_region
      _
    $region9: #{tpu_custom_call.1} parent=1 // pred_fallthru
      _
    // Predicated region
    $region10: #{tpu_custom_call.1} parent=1 // pred_check
      _
    $region11: #{tpu_custom_call.1} parent=1 // pred_check_branch
      %29 = sbr.rel (0) target = $region13
    $region12: #{tpu_custom_call.1} parent=1 // pred_region
      _
    $region13: #{tpu_custom_call.1} parent=1 // pred_fallthru
      _
    // Predicated region
    $region14: #{tpu_custom_call.1} parent=1 // pred_check
      _
    $region15: #{tpu_custom_call.1} parent=1 // pred_check_branch
      %31 = sbr.rel (0) target = $region17
    $region16: #{tpu_custom_call.1} parent=1 // pred_region
      %s33 = ssub.s32 2048, 2048
      %34 = vsyncadd [#allocation7], %s33
      %s35 = sshll.u32 [#allocation6], 4
      %s36 = int_to_ptr.vmem [resolvable:$true] %s35
      %41 = dma.hbm_to_vmem [thread:$0]  %s3, 2048, %s36, [#allocation7], 256, 256, 16
    $region17: #{tpu_custom_call.1} parent=1 // pred_fallthru
      _
    // Predicated region
    $region18: #{tpu_custom_call.1} parent=1 // pred_check
      _
    $region19: #{tpu_custom_call.1} parent=1 // pred_check_branch
      %43 = sbr.rel (0) target = $region21
    $region20: #{tpu_custom_call.1} parent=1 // pred_region
      %s45 = ssub.s32 2048, 2048
      %46 = vsyncadd [#allocation7], %s45
      %s47 = sshll.u32 [#allocation8], 4
      %s48 = int_to_ptr.vmem [resolvable:$true] %s47
      %53 = dma.hbm_to_vmem [thread:$0]  %s4, 2048, %s48, [#allocation7], 256, 256, 16
    $region21: #{tpu_custom_call.1} parent=1 // pred_fallthru
      _
    // Predicated region
    $region22: #{tpu_custom_call.1} parent=1 // pred_check
      _
    $region23: #{tpu_custom_call.1} parent=1 // pred_check_branch
      %55 = sbr.rel (0) target = $region25
    $region24: #{tpu_custom_call.1} parent=1 // pred_region
      _
    $region25: #{tpu_custom_call.1} parent=1 // pred_fallthru
      _
    // Predicated region
    $region26: #{tpu_custom_call.1} parent=1 // pred_check
      _
    $region27: #{tpu_custom_call.1} parent=1 // pred_check_branch
      %57 = sbr.rel (0) target = $region29
    $region28: #{tpu_custom_call.1} parent=1 // pred_region
      %58 = dma.done [#allocation4], 1024
    $region29: #{tpu_custom_call.1} parent=1 // pred_fallthru
      _
    // Predicated region
    $region30: #{tpu_custom_call.1} parent=1 // pred_check
      _
    $region31: #{tpu_custom_call.1} parent=1 // pred_check_branch
      %60 = sbr.rel (0) target = $region33
    $region32: #{tpu_custom_call.1} parent=1 // pred_region
      %61 = dma.done [#allocation7], 2048
    $region33: #{tpu_custom_call.1} parent=1 // pred_fallthru
      _
    // Predicated region
    $region34: #{tpu_custom_call.1} parent=1 // pred_check
      _
    $region35: #{tpu_custom_call.1} parent=1 // pred_check_branch
      %63 = sbr.rel (0) target = $region37
    $region36: #{tpu_custom_call.1} parent=1 // pred_region
      %64 = dma.done [#allocation7], 2048
    $region37: #{tpu_custom_call.1} parent=1 // pred_fallthru
      _
    %v65 = vld [vmem:[#allocation3] sm:$0xff]
    %v66 = vld [vmem:[#allocation3 + $0x8] sm:$0xff]
    %v67 = vld [vmem:[#allocation3 + $0x10] sm:$0xff]
    %v68 = vld [vmem:[#allocation3 + $0x18] sm:$0xff]
    %v69 = vld [vmem:[#allocation3 + $0x20] sm:$0xff]
    %v70 = vld [vmem:[#allocation3 + $0x28] sm:$0xff]
    %v71 = vld [vmem:[#allocation3 + $0x30] sm:$0xff]
    %v72 = vld [vmem:[#allocation3 + $0x38] sm:$0xff]
    %v73 = vld [vmem:[#allocation6] sm:$0xff]
    %v74 = vld [vmem:[#allocation6 + $0x8] sm:$0xff]
    %v75 = vld [vmem:[#allocation6 + $0x10] sm:$0xff]
    %v76 = vld [vmem:[#allocation6 + $0x18] sm:$0xff]
    %v77 = vld [vmem:[#allocation6 + $0x20] sm:$0xff]
    %v78 = vld [vmem:[#allocation6 + $0x28] sm:$0xff]
    %v79 = vld [vmem:[#allocation6 + $0x30] sm:$0xff]
    %v80 = vld [vmem:[#allocation6 + $0x38] sm:$0xff]
    %v81 = vld [vmem:[#allocation6 + $0x40] sm:$0xff]
    %v82 = vld [vmem:[#allocation6 + $0x48] sm:$0xff]
    %v83 = vld [vmem:[#allocation6 + $0x50] sm:$0xff]
    %v84 = vld [vmem:[#allocation6 + $0x58] sm:$0xff]
    %v85 = vld [vmem:[#allocation6 + $0x60] sm:$0xff]
    %v86 = vld [vmem:[#allocation6 + $0x68] sm:$0xff]
    %v87 = vld [vmem:[#allocation6 + $0x70] sm:$0xff]
    %v88 = vld [vmem:[#allocation6 + $0x78] sm:$0xff]
    %v89 = vld [vmem:[%s5] sm:$0x3]
    %v91 = vlaneseq
    %v92 = vshrl.u32 %v91, 7
    %v93 = vsub.s32 0, %v92
    %v94 = vrot.slane %v89, %v93
    %v95 = vlaneseq
    %v96 = vshrl.u32 %v95, 7
    %v97 = vsub.s32 1, %v96
    %v98 = vrot.slane %v89, %v97
    %vm101 = vcmask 523264
    %v103 = vsel %vm101, %v65, 0
    %v106 = vsel %vm101, %v66, 0
    %v109 = vsel %vm101, %v67, 0
    %v112 = vsel %vm101, %v68, 0
    %v115 = vsel %vm101, %v69, 0
    %v118 = vsel %vm101, %v70, 0
    %v121 = vsel %vm101, %v71, 0
    %v124 = vsel %vm101, %v72, 0
    %126 = vmatprep.subr.mxu0 %v74
    %127 = vmatpush1.msra.mxu0 %v73
    %128 = vmatprep.subr.mxu0 %v76
    %129 = vmatpush1.msra.mxu0 %v75
    %130 = vmatprep.subr.mxu0 %v78
    %131 = vmatpush1.msra.mxu0 %v77
    %132 = vmatprep.subr.mxu0 %v80
    %133 = vmatpush1.msra.mxu0 %v79
    %134 = vmatprep.subr.mxu0 %v82
    %135 = vmatpush1.msra.mxu0 %v81
    %136 = vmatprep.subr.mxu0 %v84
    %137 = vmatpush1.msra.mxu0 %v83
    %138 = vmatprep.subr.mxu0 %v86
    %139 = vmatpush1.msra.mxu0 %v85
    %140 = vmatprep.subr.mxu0 %v88
    %141 = vmatpush1.msra.mxu0 %v87
    %142 = vmatprep.subr.mxu0 0.0
    %143 = vmatpush1.msra.mxu0 0.0
    %144 = vmatprep.subr.mxu0 0.0
    %145 = vmatpush1.msra.mxu0 0.0
    %146 = vmatprep.subr.mxu0 0.0
    %147 = vmatpush1.msra.mxu0 0.0
    %148 = vmatprep.subr.mxu0 0.0
    %149 = vmatpush1.msra.mxu0 0.0
    %150 = vmatprep.subr.mxu0 0.0
    %151 = vmatpush1.msra.mxu0 0.0
    %152 = vmatprep.subr.mxu0 0.0
    %153 = vmatpush1.msra.mxu0 0.0
    %154 = vmatprep.subr.mxu0 0.0
    %155 = vmatpush1.msra.mxu0 0.0
    %156 = vmatprep.subr.mxu0 0.0
    %157 = vmatpush1.msra.mxu0 0.0
    %158 = vmatprep.subr.mxu0 0.0
    %159 = vmatpush1.msra.mxu0 0.0
    %160 = vmatprep.subr.mxu0 0.0
    %161 = vmatpush1.msra.mxu0 0.0
    %162 = vmatprep.subr.mxu0 0.0
    %163 = vmatpush1.msra.mxu0 0.0
    %164 = vmatprep.subr.mxu0 0.0
    %165 = vmatpush1.msra.mxu0 0.0
    %166 = vmatprep.subr.mxu0 0.0
    %167 = vmatpush1.msra.mxu0 0.0
    %168 = vmatprep.subr.mxu0 0.0
    %169 = vmatpush1.msra.mxu0 0.0
    %170 = vmatprep.subr.mxu0 0.0
    %171 = vmatpush1.msra.mxu0 0.0
    %172 = vmatprep.subr.mxu0 0.0
    %173 = vmatpush1.msra.mxu0 0.0
    %174 = vmatprep.subr.mxu0 0.0
    %175 = vmatpush1.msra.mxu0 0.0
    %176 = vmatprep.subr.mxu0 0.0
    %177 = vmatpush1.msra.mxu0 0.0
    %178 = vmatprep.subr.mxu0 0.0
    %179 = vmatpush1.msra.mxu0 0.0
    %180 = vmatprep.subr.mxu0 0.0
    %181 = vmatpush1.msra.mxu0 0.0
    %182 = vmatprep.subr.mxu0 0.0
    %183 = vmatpush1.msra.mxu0 0.0
    %184 = vmatprep.subr.mxu0 0.0
    %185 = vmatpush1.msra.mxu0 0.0
    %186 = vmatprep.subr.mxu0 0.0
    %187 = vmatpush1.msra.mxu0 0.0
    %188 = vmatprep.subr.mxu0 0.0
    %189 = vmatpush1.msra.mxu0 0.0
    %190 = vmatprep.mubr.f32.mxu0 0.0
    %191 = vmatmul.mubr.f32.gmra.mrb[0].mxu0 %v103
    %v192 = vpop.f32.mrb[0].mxu0
    %v193 = vadd.f32 %v94, %v192
    %v194 = vpop.f32.mrb[0].mxu0
    %v195 = vadd.f32 %v98, %v194
    %196 = vmatprep.mubr.f32.mxu0 0.0
    %197 = vmatmul.mubr.f32.gmra.mrb[0].mxu0 %v106
    %v198 = vpop.f32.mrb[0].mxu0
    %v199 = vadd.f32 %v94, %v198
    %v200 = vpop.f32.mrb[0].mxu0
    %v201 = vadd.f32 %v98, %v200
    %202 = vmatprep.mubr.f32.mxu0 0.0
    %203 = vmatmul.mubr.f32.gmra.mrb[0].mxu0 %v109
    %v204 = vpop.f32.mrb[0].mxu0
    %v205 = vadd.f32 %v94, %v204
    %v206 = vpop.f32.mrb[0].mxu0
    %v207 = vadd.f32 %v98, %v206
    %208 = vmatprep.mubr.f32.mxu0 0.0
    %209 = vmatmul.mubr.f32.gmra.mrb[0].mxu0 %v112
    %v210 = vpop.f32.mrb[0].mxu0
    %v211 = vadd.f32 %v94, %v210
    %v212 = vpop.f32.mrb[0].mxu0
    %v213 = vadd.f32 %v98, %v212
    %214 = vmatprep.mubr.f32.mxu0 0.0
    %215 = vmatmul.mubr.f32.gmra.mrb[0].mxu0 %v115
    %v216 = vpop.f32.mrb[0].mxu0
    %v217 = vadd.f32 %v94, %v216
    %v218 = vpop.f32.mrb[0].mxu0
    %v219 = vadd.f32 %v98, %v218
    %220 = vmatprep.mubr.f32.mxu0 0.0
    %221 = vmatmul.mubr.f32.gmra.mrb[0].mxu0 %v118
    %v222 = vpop.f32.mrb[0].mxu0
    %v223 = vadd.f32 %v94, %v222
    %v224 = vpop.f32.mrb[0].mxu0
    %v225 = vadd.f32 %v98, %v224
    %226 = vmatprep.mubr.f32.mxu0 0.0
    %227 = vmatmul.mubr.f32.gmra.mrb[0].mxu0 %v121
    %v228 = vpop.f32.mrb[0].mxu0
    %v229 = vadd.f32 %v94, %v228
    %v230 = vpop.f32.mrb[0].mxu0
    %v231 = vadd.f32 %v98, %v230
    %232 = vmatprep.mubr.f32.mxu0 0.0
    %233 = vmatmul.mubr.f32.gmra.mrb[0].mxu0 %v124
    %v234 = vpop.f32.mrb[0].mxu0
    %v235 = vadd.f32 %v94, %v234
    %v236 = vpop.f32.mrb[0].mxu0
    %v237 = vadd.f32 %v98, %v236
    %238 = vdwg.mxu0
    %239 = vst [vmem:[#allocation2] sm:$0xff] %v193
    %240 = vst [vmem:[#allocation2 + $0x8] sm:$0xff] %v195
    %241 = vst [vmem:[#allocation2 + $0x10] sm:$0xff] %v199
    %242 = vst [vmem:[#allocation2 + $0x18] sm:$0xff] %v201
    %243 = vst [vmem:[#allocation2 + $0x20] sm:$0xff] %v205
    %244 = vst [vmem:[#allocation2 + $0x28] sm:$0xff] %v207
    %245 = vst [vmem:[#allocation2 + $0x30] sm:$0xff] %v211
    %246 = vst [vmem:[#allocation2 + $0x38] sm:$0xff] %v213
    %247 = vst [vmem:[#allocation2 + $0x40] sm:$0xff] %v217
    %248 = vst [vmem:[#allocation2 + $0x48] sm:$0xff] %v219
    %249 = vst [vmem:[#allocation2 + $0x50] sm:$0xff] %v223
    %250 = vst [vmem:[#allocation2 + $0x58] sm:$0xff] %v225
    %251 = vst [vmem:[#allocation2 + $0x60] sm:$0xff] %v229
    %252 = vst [vmem:[#allocation2 + $0x68] sm:$0xff] %v231
    %253 = vst [vmem:[#allocation2 + $0x70] sm:$0xff] %v235
    %254 = vst [vmem:[#allocation2 + $0x78] sm:$0xff] %v237
    %v255 = vld [vmem:[%s1] sm:$0xff]
    %v256 = vld [vmem:[#allocation8] sm:$0xff]
    %v257 = vld [vmem:[#allocation8 + $0x8] sm:$0xff]
    %v258 = vld [vmem:[#allocation8 + $0x10] sm:$0xff]
    %v259 = vld [vmem:[#allocation8 + $0x18] sm:$0xff]
    %v260 = vld [vmem:[#allocation8 + $0x20] sm:$0xff]
    %v261 = vld [vmem:[#allocation8 + $0x28] sm:$0xff]
    %v262 = vld [vmem:[#allocation8 + $0x30] sm:$0xff]
    %v263 = vld [vmem:[#allocation8 + $0x38] sm:$0xff]
    %v264 = vld [vmem:[#allocation8 + $0x40] sm:$0xff]
    %v265 = vld [vmem:[#allocation8 + $0x48] sm:$0xff]
    %v266 = vld [vmem:[#allocation8 + $0x50] sm:$0xff]
    %v267 = vld [vmem:[#allocation8 + $0x58] sm:$0xff]
    %v268 = vld [vmem:[#allocation8 + $0x60] sm:$0xff]
    %v269 = vld [vmem:[#allocation8 + $0x68] sm:$0xff]
    %v270 = vld [vmem:[#allocation8 + $0x70] sm:$0xff]
    %v271 = vld [vmem:[#allocation8 + $0x78] sm:$0xff]
    %s272 = smul.u32 0, 2
    %s273 = smul.addr %s272, 8
    %s274 = scalar_lea.vmem [#allocation2], %s273
    %v275 = vld [vmem:[%s274] sm:$0xff]
    %v276 = vld [vmem:[%s274 + $0x8] sm:$0xff]
    %v278 = vsel %vm101, 0.0, 0
    %280 = vmatprep.subr.mxu0 %v257
    %281 = vmatpush1.msra.mxu0 %v256
    %282 = vmatprep.subr.mxu0 %v259
    %283 = vmatpush1.msra.mxu0 %v258
    %284 = vmatprep.subr.mxu0 %v261
    %285 = vmatpush1.msra.mxu0 %v260
    %286 = vmatprep.subr.mxu0 %v263
    %287 = vmatpush1.msra.mxu0 %v262
    %288 = vmatprep.subr.mxu0 %v265
    %289 = vmatpush1.msra.mxu0 %v264
    %290 = vmatprep.subr.mxu0 %v267
    %291 = vmatpush1.msra.mxu0 %v266
    %292 = vmatprep.subr.mxu0 %v269
    %293 = vmatpush1.msra.mxu0 %v268
    %294 = vmatprep.subr.mxu0 %v271
    %295 = vmatpush1.msra.mxu0 %v270
    %296 = vmatprep.subr.mxu0 0.0
    %297 = vmatpush1.msra.mxu0 0.0
    %298 = vmatprep.subr.mxu0 0.0
    %299 = vmatpush1.msra.mxu0 0.0
    %300 = vmatprep.subr.mxu0 0.0
    %301 = vmatpush1.msra.mxu0 0.0
    %302 = vmatprep.subr.mxu0 0.0
    %303 = vmatpush1.msra.mxu0 0.0
    %304 = vmatprep.subr.mxu0 0.0
    %305 = vmatpush1.msra.mxu0 0.0
    %306 = vmatprep.subr.mxu0 0.0
    %307 = vmatpush1.msra.mxu0 0.0
    %308 = vmatprep.subr.mxu0 0.0
    %309 = vmatpush1.msra.mxu0 0.0
    %310 = vmatprep.subr.mxu0 0.0
    %311 = vmatpush1.msra.mxu0 0.0
    %312 = vmatprep.subr.mxu0 0.0
    %313 = vmatpush1.msra.mxu0 0.0
    %314 = vmatprep.subr.mxu0 0.0
    %315 = vmatpush1.msra.mxu0 0.0
    %316 = vmatprep.subr.mxu0 0.0
    %317 = vmatpush1.msra.mxu0 0.0
    %318 = vmatprep.subr.mxu0 0.0
    %319 = vmatpush1.msra.mxu0 0.0
    %320 = vmatprep.subr.mxu0 0.0
    %321 = vmatpush1.msra.mxu0 0.0
    %322 = vmatprep.subr.mxu0 0.0
    %323 = vmatpush1.msra.mxu0 0.0
    %324 = vmatprep.subr.mxu0 0.0
    %325 = vmatpush1.msra.mxu0 0.0
    %326 = vmatprep.subr.mxu0 0.0
    %327 = vmatpush1.msra.mxu0 0.0
    %328 = vmatprep.subr.mxu0 0.0
    %329 = vmatpush1.msra.mxu0 0.0
    %330 = vmatprep.subr.mxu0 0.0
    %331 = vmatpush1.msra.mxu0 0.0
    %332 = vmatprep.subr.mxu0 0.0
    %333 = vmatpush1.msra.mxu0 0.0
    %334 = vmatprep.subr.mxu0 0.0
    %335 = vmatpush1.msra.mxu0 0.0
    %336 = vmatprep.subr.mxu0 0.0
    %337 = vmatpush1.msra.mxu0 0.0
    %338 = vmatprep.subr.mxu0 0.0
    %339 = vmatpush1.msra.mxu0 0.0
    %340 = vmatprep.subr.mxu0 0.0
    %341 = vmatpush1.msra.mxu0 0.0
    %342 = vmatprep.subr.mxu0 0.0
    %343 = vmatpush1.msra.mxu0 0.0
    %344 = vmatprep.mubr.f32.mxu0 0.0
    %345 = vmatmul.mubr.f32.gmra.mrb[0].mxu0 %v278
    %v346 = vpop.f32.mrb[0].mxu0
    %v347 = vadd.f32 0.0, %v346
    %v348 = vpop.f32.mrb[0].mxu0
    %v349 = vadd.f32 0.0, %v348
    %350 = vdwg.mxu0
    %v351 = vadd.f32 %v275, %v347
    %v352 = vadd.f32 %v276, %v349
    %v353 = vxor.u32 %v351, 2147483648
    %v354 = vmul.f32 %v353, 1.442695
    %v355 = vpow.pop %v354
    %v356 = vadd.f32 %v355, 1.0
    %v357 = vrcp.pop %v356
    %v358 = vmul.f32 1.0, %v357
    %v359 = vtanh.pop %v352
    %v360 = vxor.u32 %v352, 2147483648
    %v361 = vmul.f32 %v360, 1.442695
    %v362 = vpow.pop %v361
    %v363 = vadd.f32 %v362, 1.0
    %v364 = vrcp.pop %v363
    %v365 = vmul.f32 1.0, %v364
    %v366 = vmul.f32 %v358, 0.0
    %v367 = vmul.f32 %v358, %v359
    %369 = vrot.lane.b32.xlu0 %v367, 64
    %v370 = vpop.permute.xlu0 %369
    %v372 = vadd.f32 %v366, %v370
    %v373 = vtanh.pop %v372
    %v374 = vmul.f32 %v365, %v373
    %v375 = vld [vmem:[%s2] sm:$0x1]
    %377 = vset.pattern.permute.xlu0 0
    %378 = vperm.xlu0 %377, %v255
    %v379 = vpop.permute.xlu0 %378
    %v382 = vlaneseq
    %v383 = vshrl.u32 %v382, 7
    %v384 = vsub.s32 0, %v383
    %v385 = vrot.slane %v375, %v384
    %vm387 = vcmp.gt.f32.partialorder %v379, %v385
    %389 = vrot.lane.b32.xlu0 %v374, 64
    %v390 = vpop.permute.xlu0 %389
    %v392 = vsel %vm387, %v390, 0.0
    %394 = vrot.lane.b32.xlu0 %v372, 64
    %v395 = vpop.permute.xlu0 %394
    %v397 = vsel %vm387, %v395, 0.0
    %s398 = smul.u32 1, 2
    %s399 = smul.addr %s398, 8
    %s400 = scalar_lea.vmem [#allocation2], %s399
    %v401 = vld [vmem:[%s400] sm:$0xff]
    %v402 = vld [vmem:[%s400 + $0x8] sm:$0xff]
    %v404 = vsel %vm101, %v392, 0
    %406 = vmatprep.subr.mxu0 %v257
    %407 = vmatpush1.msra.mxu0 %v256
    %408 = vmatprep.subr.mxu0 %v259
    %409 = vmatpush1.msra.mxu0 %v258
    %410 = vmatprep.subr.mxu0 %v261
    %411 = vmatpush1.msra.mxu0 %v260
    %412 = vmatprep.subr.mxu0 %v263
    %413 = vmatpush1.msra.mxu0 %v262
    %414 = vmatprep.subr.mxu0 %v265
    %415 = vmatpush1.msra.mxu0 %v264
    %416 = vmatprep.subr.mxu0 %v267
    %417 = vmatpush1.msra.mxu0 %v266
    %418 = vmatprep.subr.mxu0 %v269
    %419 = vmatpush1.msra.mxu0 %v268
    %420 = vmatprep.subr.mxu0 %v271
    %421 = vmatpush1.msra.mxu0 %v270
    %422 = vmatprep.subr.mxu0 0.0
    %423 = vmatpush1.msra.mxu0 0.0
    %424 = vmatprep.subr.mxu0 0.0
    %425 = vmatpush1.msra.mxu0 0.0
    %426 = vmatprep.subr.mxu0 0.0
    %427 = vmatpush1.msra.mxu0 0.0
    %428 = vmatprep.subr.mxu0 0.0
    %429 = vmatpush1.msra.mxu0 0.0
    %430 = vmatprep.subr.mxu0 0.0
    %431 = vmatpush1.msra.mxu0 0.0
    %432 = vmatprep.subr.mxu0 0.0
    %433 = vmatpush1.msra.mxu0 0.0
    %434 = vmatprep.subr.mxu0 0.0
    %435 = vmatpush1.msra.mxu0 0.0
    %436 = vmatprep.subr.mxu0 0.0
    %437 = vmatpush1.msra.mxu0 0.0
    %438 = vmatprep.subr.mxu0 0.0
    %439 = vmatpush1.msra.mxu0 0.0
    %440 = vmatprep.subr.mxu0 0.0
    %441 = vmatpush1.msra.mxu0 0.0
    %442 = vmatprep.subr.mxu0 0.0
    %443 = vmatpush1.msra.mxu0 0.0
    %444 = vmatprep.subr.mxu0 0.0
    %445 = vmatpush1.msra.mxu0 0.0
    %446 = vmatprep.subr.mxu0 0.0
    %447 = vmatpush1.msra.mxu0 0.0
    %448 = vmatprep.subr.mxu0 0.0
    %449 = vmatpush1.msra.mxu0 0.0
    %450 = vmatprep.subr.mxu0 0.0
    %451 = vmatpush1.msra.mxu0 0.0
    %452 = vmatprep.subr.mxu0 0.0
    %453 = vmatpush1.msra.mxu0 0.0
    %454 = vmatprep.subr.mxu0 0.0
    %455 = vmatpush1.msra.mxu0 0.0
    %456 = vmatprep.subr.mxu0 0.0
    %457 = vmatpush1.msra.mxu0 0.0
    %458 = vmatprep.subr.mxu0 0.0
    %459 = vmatpush1.msra.mxu0 0.0
    %460 = vmatprep.subr.mxu0 0.0
    %461 = vmatpush1.msra.mxu0 0.0
    %462 = vmatprep.subr.mxu0 0.0
    %463 = vmatpush1.msra.mxu0 0.0
    %464 = vmatprep.subr.mxu0 0.0
    %465 = vmatpush1.msra.mxu0 0.0
    %466 = vmatprep.subr.mxu0 0.0
    %467 = vmatpush1.msra.mxu0 0.0
    %468 = vmatprep.subr.mxu0 0.0
    %469 = vmatpush1.msra.mxu0 0.0
    %470 = vmatprep.mubr.f32.mxu0 0.0
    %471 = vmatmul.mubr.f32.gmra.mrb[0].mxu0 %v404
    %v472 = vpop.f32.mrb[0].mxu0
    %v473 = vadd.f32 0.0, %v472
    %v474 = vpop.f32.mrb[0].mxu0
    %v475 = vadd.f32 0.0, %v474
    %476 = vdwg.mxu0
    %v477 = vadd.f32 %v401, %v473
    %v478 = vadd.f32 %v402, %v475
    %v479 = vxor.u32 %v477, 2147483648
    %v480 = vmul.f32 %v479, 1.442695
    %v481 = vpow.pop %v480
    %v482 = vadd.f32 %v481, 1.0
    %v483 = vrcp.pop %v482
    %v484 = vmul.f32 1.0, %v483
    %v485 = vtanh.pop %v478
    %v486 = vxor.u32 %v478, 2147483648
    %v487 = vmul.f32 %v486, 1.442695
    %v488 = vpow.pop %v487
    %v489 = vadd.f32 %v488, 1.0
    %v490 = vrcp.pop %v489
    %v491 = vmul.f32 1.0, %v490
    %493 = vrot.lane.b32.xlu0 %v397, 64
    %v494 = vpop.permute.xlu0 %493
    %v496 = vmul.f32 %v484, %v494
    %v497 = vmul.f32 %v484, %v485
    %499 = vrot.lane.b32.xlu0 %v497, 64
    %v500 = vpop.permute.xlu0 %499
    %v502 = vadd.f32 %v496, %v500
    %v503 = vtanh.pop %v502
    %v504 = vmul.f32 %v491, %v503
    %s505 = scalar_lea.vmem %s2, 1
    %v506 = vld [vmem:[%s505] sm:$0x1]
    %v508 = vlaneseq
    %v509 = vshrl.u32 %v508, 7
    %v510 = vsub.s32 0, %v509
    %v511 = vrot.slane %v506, %v510
    %vm513 = vcmp.gt.f32.partialorder %v379, %v511
    %515 = vrot.lane.b32.xlu0 %v504, 64
    %v516 = vpop.permute.xlu0 %515
    %v518 = vsel %vm513, %v516, %v392
    %520 = vrot.lane.b32.xlu0 %v502, 64
    %v521 = vpop.permute.xlu0 %520
    %v523 = vsel %vm513, %v521, %v397
    %v524 = vsel %vm513, %v516, 0.0
    %v525 = vmax.f32 %v392, %v524
    %s526 = smul.u32 2, 2
    %s527 = smul.addr %s526, 8
    %s528 = scalar_lea.vmem [#allocation2], %s527
    %v529 = vld [vmem:[%s528] sm:$0xff]
    %v530 = vld [vmem:[%s528 + $0x8] sm:$0xff]
    %v532 = vsel %vm101, %v518, 0
    %534 = vmatprep.subr.mxu0 %v257
    %535 = vmatpush1.msra.mxu0 %v256
    %536 = vmatprep.subr.mxu0 %v259
    %537 = vmatpush1.msra.mxu0 %v258
    %538 = vmatprep.subr.mxu0 %v261
    %539 = vmatpush1.msra.mxu0 %v260
    %540 = vmatprep.subr.mxu0 %v263
    %541 = vmatpush1.msra.mxu0 %v262
    %542 = vmatprep.subr.mxu0 %v265
    %543 = vmatpush1.msra.mxu0 %v264
    %544 = vmatprep.subr.mxu0 %v267
    %545 = vmatpush1.msra.mxu0 %v266
    %546 = vmatprep.subr.mxu0 %v269
    %547 = vmatpush1.msra.mxu0 %v268
    %548 = vmatprep.subr.mxu0 %v271
    %549 = vmatpush1.msra.mxu0 %v270
    %550 = vmatprep.subr.mxu0 0.0
    %551 = vmatpush1.msra.mxu0 0.0
    %552 = vmatprep.subr.mxu0 0.0
    %553 = vmatpush1.msra.mxu0 0.0
    %554 = vmatprep.subr.mxu0 0.0
    %555 = vmatpush1.msra.mxu0 0.0
    %556 = vmatprep.subr.mxu0 0.0
    %557 = vmatpush1.msra.mxu0 0.0
    %558 = vmatprep.subr.mxu0 0.0
    %559 = vmatpush1.msra.mxu0 0.0
    %560 = vmatprep.subr.mxu0 0.0
    %561 = vmatpush1.msra.mxu0 0.0
    %562 = vmatprep.subr.mxu0 0.0
    %563 = vmatpush1.msra.mxu0 0.0
    %564 = vmatprep.subr.mxu0 0.0
    %565 = vmatpush1.msra.mxu0 0.0
    %566 = vmatprep.subr.mxu0 0.0
    %567 = vmatpush1.msra.mxu0 0.0
    %568 = vmatprep.subr.mxu0 0.0
    %569 = vmatpush1.msra.mxu0 0.0
    %570 = vmatprep.subr.mxu0 0.0
    %571 = vmatpush1.msra.mxu0 0.0
    %572 = vmatprep.subr.mxu0 0.0
    %573 = vmatpush1.msra.mxu0 0.0
    %574 = vmatprep.subr.mxu0 0.0
    %575 = vmatpush1.msra.mxu0 0.0
    %576 = vmatprep.subr.mxu0 0.0
    %577 = vmatpush1.msra.mxu0 0.0
    %578 = vmatprep.subr.mxu0 0.0
    %579 = vmatpush1.msra.mxu0 0.0
    %580 = vmatprep.subr.mxu0 0.0
    %581 = vmatpush1.msra.mxu0 0.0
    %582 = vmatprep.subr.mxu0 0.0
    %583 = vmatpush1.msra.mxu0 0.0
    %584 = vmatprep.subr.mxu0 0.0
    %585 = vmatpush1.msra.mxu0 0.0
    %586 = vmatprep.subr.mxu0 0.0
    %587 = vmatpush1.msra.mxu0 0.0
    %588 = vmatprep.subr.mxu0 0.0
    %589 = vmatpush1.msra.mxu0 0.0
    %590 = vmatprep.subr.mxu0 0.0
    %591 = vmatpush1.msra.mxu0 0.0
    %592 = vmatprep.subr.mxu0 0.0
    %593 = vmatpush1.msra.mxu0 0.0
    %594 = vmatprep.subr.mxu0 0.0
    %595 = vmatpush1.msra.mxu0 0.0
    %596 = vmatprep.subr.mxu0 0.0
    %597 = vmatpush1.msra.mxu0 0.0
    %598 = vmatprep.mubr.f32.mxu0 0.0
    %599 = vmatmul.mubr.f32.gmra.mrb[0].mxu0 %v532
    %v600 = vpop.f32.mrb[0].mxu0
    %v601 = vadd.f32 0.0, %v600
    %v602 = vpop.f32.mrb[0].mxu0
    %v603 = vadd.f32 0.0, %v602
    %604 = vdwg.mxu0
    %v605 = vadd.f32 %v529, %v601
    %v606 = vadd.f32 %v530, %v603
    %v607 = vxor.u32 %v605, 2147483648
    %v608 = vmul.f32 %v607, 1.442695
    %v609 = vpow.pop %v608
    %v610 = vadd.f32 %v609, 1.0
    %v611 = vrcp.pop %v610
    %v612 = vmul.f32 1.0, %v611
    %v613 = vtanh.pop %v606
    %v614 = vxor.u32 %v606, 2147483648
    %v615 = vmul.f32 %v614, 1.442695
    %v616 = vpow.pop %v615
    %v617 = vadd.f32 %v616, 1.0
    %v618 = vrcp.pop %v617
    %v619 = vmul.f32 1.0, %v618
    %621 = vrot.lane.b32.xlu0 %v523, 64
    %v622 = vpop.permute.xlu0 %621
    %v624 = vmul.f32 %v612, %v622
    %v625 = vmul.f32 %v612, %v613
    %627 = vrot.lane.b32.xlu0 %v625, 64
    %v628 = vpop.permute.xlu0 %627
    %v630 = vadd.f32 %v624, %v628
    %v631 = vtanh.pop %v630
    %v632 = vmul.f32 %v619, %v631
    %s633 = scalar_lea.vmem %s2, 2
    %v634 = vld [vmem:[%s633] sm:$0x1]
    %v636 = vlaneseq
    %v637 = vshrl.u32 %v636, 7
    %v638 = vsub.s32 0, %v637
    %v639 = vrot.slane %v634, %v638
    %vm641 = vcmp.gt.f32.partialorder %v379, %v639
    %643 = vrot.lane.b32.xlu0 %v632, 64
    %v644 = vpop.permute.xlu0 %643
    %v646 = vsel %vm641, %v644, %v518
    %648 = vrot.lane.b32.xlu0 %v630, 64
    %v649 = vpop.permute.xlu0 %648
    %v651 = vsel %vm641, %v649, %v523
    %v652 = vsel %vm641, %v644, 0.0
    %v653 = vmax.f32 %v525, %v652
    %s654 = smul.u32 3, 2
    %s655 = smul.addr %s654, 8
    %s656 = scalar_lea.vmem [#allocation2], %s655
    %v657 = vld [vmem:[%s656] sm:$0xff]
    %v658 = vld [vmem:[%s656 + $0x8] sm:$0xff]
    %v660 = vsel %vm101, %v646, 0
    %662 = vmatprep.subr.mxu0 %v257
    %663 = vmatpush1.msra.mxu0 %v256
    %664 = vmatprep.subr.mxu0 %v259
    %665 = vmatpush1.msra.mxu0 %v258
    %666 = vmatprep.subr.mxu0 %v261
    %667 = vmatpush1.msra.mxu0 %v260
    %668 = vmatprep.subr.mxu0 %v263
    %669 = vmatpush1.msra.mxu0 %v262
    %670 = vmatprep.subr.mxu0 %v265
    %671 = vmatpush1.msra.mxu0 %v264
    %672 = vmatprep.subr.mxu0 %v267
    %673 = vmatpush1.msra.mxu0 %v266
    %674 = vmatprep.subr.mxu0 %v269
    %675 = vmatpush1.msra.mxu0 %v268
    %676 = vmatprep.subr.mxu0 %v271
    %677 = vmatpush1.msra.mxu0 %v270
    %678 = vmatprep.subr.mxu0 0.0
    %679 = vmatpush1.msra.mxu0 0.0
    %680 = vmatprep.subr.mxu0 0.0
    %681 = vmatpush1.msra.mxu0 0.0
    %682 = vmatprep.subr.mxu0 0.0
    %683 = vmatpush1.msra.mxu0 0.0
    %684 = vmatprep.subr.mxu0 0.0
    %685 = vmatpush1.msra.mxu0 0.0
    %686 = vmatprep.subr.mxu0 0.0
    %687 = vmatpush1.msra.mxu0 0.0
    %688 = vmatprep.subr.mxu0 0.0
    %689 = vmatpush1.msra.mxu0 0.0
    %690 = vmatprep.subr.mxu0 0.0
    %691 = vmatpush1.msra.mxu0 0.0
    %692 = vmatprep.subr.mxu0 0.0
    %693 = vmatpush1.msra.mxu0 0.0
    %694 = vmatprep.subr.mxu0 0.0
    %695 = vmatpush1.msra.mxu0 0.0
    %696 = vmatprep.subr.mxu0 0.0
    %697 = vmatpush1.msra.mxu0 0.0
    %698 = vmatprep.subr.mxu0 0.0
    %699 = vmatpush1.msra.mxu0 0.0
    %700 = vmatprep.subr.mxu0 0.0
    %701 = vmatpush1.msra.mxu0 0.0
    %702 = vmatprep.subr.mxu0 0.0
    %703 = vmatpush1.msra.mxu0 0.0
    %704 = vmatprep.subr.mxu0 0.0
    %705 = vmatpush1.msra.mxu0 0.0
    %706 = vmatprep.subr.mxu0 0.0
    %707 = vmatpush1.msra.mxu0 0.0
    %708 = vmatprep.subr.mxu0 0.0
    %709 = vmatpush1.msra.mxu0 0.0
    %710 = vmatprep.subr.mxu0 0.0
    %711 = vmatpush1.msra.mxu0 0.0
    %712 = vmatprep.subr.mxu0 0.0
    %713 = vmatpush1.msra.mxu0 0.0
    %714 = vmatprep.subr.mxu0 0.0
    %715 = vmatpush1.msra.mxu0 0.0
    %716 = vmatprep.subr.mxu0 0.0
    %717 = vmatpush1.msra.mxu0 0.0
    %718 = vmatprep.subr.mxu0 0.0
    %719 = vmatpush1.msra.mxu0 0.0
    %720 = vmatprep.subr.mxu0 0.0
    %721 = vmatpush1.msra.mxu0 0.0
    %722 = vmatprep.subr.mxu0 0.0
    %723 = vmatpush1.msra.mxu0 0.0
    %724 = vmatprep.subr.mxu0 0.0
    %725 = vmatpush1.msra.mxu0 0.0
    %726 = vmatprep.mubr.f32.mxu0 0.0
    %727 = vmatmul.mubr.f32.gmra.mrb[0].mxu0 %v660
    %v728 = vpop.f32.mrb[0].mxu0
    %v729 = vadd.f32 0.0, %v728
    %v730 = vpop.f32.mrb[0].mxu0
    %v731 = vadd.f32 0.0, %v730
    %732 = vdwg.mxu0
    %v733 = vadd.f32 %v657, %v729
    %v734 = vadd.f32 %v658, %v731
    %v735 = vxor.u32 %v733, 2147483648
    %v736 = vmul.f32 %v735, 1.442695
    %v737 = vpow.pop %v736
    %v738 = vadd.f32 %v737, 1.0
    %v739 = vrcp.pop %v738
    %v740 = vmul.f32 1.0, %v739
    %v741 = vtanh.pop %v734
    %v742 = vxor.u32 %v734, 2147483648
    %v743 = vmul.f32 %v742, 1.442695
    %v744 = vpow.pop %v743
    %v745 = vadd.f32 %v744, 1.0
    %v746 = vrcp.pop %v745
    %v747 = vmul.f32 1.0, %v746
    %749 = vrot.lane.b32.xlu0 %v651, 64
    %v750 = vpop.permute.xlu0 %749
    %v752 = vmul.f32 %v740, %v750
    %v753 = vmul.f32 %v740, %v741
    %755 = vrot.lane.b32.xlu0 %v753, 64
    %v756 = vpop.permute.xlu0 %755
    %v758 = vadd.f32 %v752, %v756
    %v759 = vtanh.pop %v758
    %v760 = vmul.f32 %v747, %v759
    %s761 = scalar_lea.vmem %s2, 3
    %v762 = vld [vmem:[%s761] sm:$0x1]
    %v764 = vlaneseq
    %v765 = vshrl.u32 %v764, 7
    %v766 = vsub.s32 0, %v765
    %v767 = vrot.slane %v762, %v766
    %vm769 = vcmp.gt.f32.partialorder %v379, %v767
    %771 = vrot.lane.b32.xlu0 %v760, 64
    %v772 = vpop.permute.xlu0 %771
    %v774 = vsel %vm769, %v772, %v646
    %776 = vrot.lane.b32.xlu0 %v758, 64
    %v777 = vpop.permute.xlu0 %776
    %v779 = vsel %vm769, %v777, %v651
    %v780 = vsel %vm769, %v772, 0.0
    %v781 = vmax.f32 %v653, %v780
    %s782 = smul.u32 4, 2
    %s783 = smul.addr %s782, 8
    %s784 = scalar_lea.vmem [#allocation2], %s783
    %v785 = vld [vmem:[%s784] sm:$0xff]
    %v786 = vld [vmem:[%s784 + $0x8] sm:$0xff]
    %v788 = vsel %vm101, %v774, 0
    %790 = vmatprep.subr.mxu0 %v257
    %791 = vmatpush1.msra.mxu0 %v256
    %792 = vmatprep.subr.mxu0 %v259
    %793 = vmatpush1.msra.mxu0 %v258
    %794 = vmatprep.subr.mxu0 %v261
    %795 = vmatpush1.msra.mxu0 %v260
    %796 = vmatprep.subr.mxu0 %v263
    %797 = vmatpush1.msra.mxu0 %v262
    %798 = vmatprep.subr.mxu0 %v265
    %799 = vmatpush1.msra.mxu0 %v264
    %800 = vmatprep.subr.mxu0 %v267
    %801 = vmatpush1.msra.mxu0 %v266
    %802 = vmatprep.subr.mxu0 %v269
    %803 = vmatpush1.msra.mxu0 %v268
    %804 = vmatprep.subr.mxu0 %v271
    %805 = vmatpush1.msra.mxu0 %v270
    %806 = vmatprep.subr.mxu0 0.0
    %807 = vmatpush1.msra.mxu0 0.0
    %808 = vmatprep.subr.mxu0 0.0
    %809 = vmatpush1.msra.mxu0 0.0
    %810 = vmatprep.subr.mxu0 0.0
    %811 = vmatpush1.msra.mxu0 0.0
    %812 = vmatprep.subr.mxu0 0.0
    %813 = vmatpush1.msra.mxu0 0.0
    %814 = vmatprep.subr.mxu0 0.0
    %815 = vmatpush1.msra.mxu0 0.0
    %816 = vmatprep.subr.mxu0 0.0
    %817 = vmatpush1.msra.mxu0 0.0
    %818 = vmatprep.subr.mxu0 0.0
    %819 = vmatpush1.msra.mxu0 0.0
    %820 = vmatprep.subr.mxu0 0.0
    %821 = vmatpush1.msra.mxu0 0.0
    %822 = vmatprep.subr.mxu0 0.0
    %823 = vmatpush1.msra.mxu0 0.0
    %824 = vmatprep.subr.mxu0 0.0
    %825 = vmatpush1.msra.mxu0 0.0
    %826 = vmatprep.subr.mxu0 0.0
    %827 = vmatpush1.msra.mxu0 0.0
    %828 = vmatprep.subr.mxu0 0.0
    %829 = vmatpush1.msra.mxu0 0.0
    %830 = vmatprep.subr.mxu0 0.0
    %831 = vmatpush1.msra.mxu0 0.0
    %832 = vmatprep.subr.mxu0 0.0
    %833 = vmatpush1.msra.mxu0 0.0
    %834 = vmatprep.subr.mxu0 0.0
    %835 = vmatpush1.msra.mxu0 0.0
    %836 = vmatprep.subr.mxu0 0.0
    %837 = vmatpush1.msra.mxu0 0.0
    %838 = vmatprep.subr.mxu0 0.0
    %839 = vmatpush1.msra.mxu0 0.0
    %840 = vmatprep.subr.mxu0 0.0
    %841 = vmatpush1.msra.mxu0 0.0
    %842 = vmatprep.subr.mxu0 0.0
    %843 = vmatpush1.msra.mxu0 0.0
    %844 = vmatprep.subr.mxu0 0.0
    %845 = vmatpush1.msra.mxu0 0.0
    %846 = vmatprep.subr.mxu0 0.0
    %847 = vmatpush1.msra.mxu0 0.0
    %848 = vmatprep.subr.mxu0 0.0
    %849 = vmatpush1.msra.mxu0 0.0
    %850 = vmatprep.subr.mxu0 0.0
    %851 = vmatpush1.msra.mxu0 0.0
    %852 = vmatprep.subr.mxu0 0.0
    %853 = vmatpush1.msra.mxu0 0.0
    %854 = vmatprep.mubr.f32.mxu0 0.0
    %855 = vmatmul.mubr.f32.gmra.mrb[0].mxu0 %v788
    %v856 = vpop.f32.mrb[0].mxu0
    %v857 = vadd.f32 0.0, %v856
    %v858 = vpop.f32.mrb[0].mxu0
    %v859 = vadd.f32 0.0, %v858
    %860 = vdwg.mxu0
    %v861 = vadd.f32 %v785, %v857
    %v862 = vadd.f32 %v786, %v859
    %v863 = vxor.u32 %v861, 2147483648
    %v864 = vmul.f32 %v863, 1.442695
    %v865 = vpow.pop %v864
    %v866 = vadd.f32 %v865, 1.0
    %v867 = vrcp.pop %v866
    %v868 = vmul.f32 1.0, %v867
    %v869 = vtanh.pop %v862
    %v870 = vxor.u32 %v862, 2147483648
    %v871 = vmul.f32 %v870, 1.442695
    %v872 = vpow.pop %v871
    %v873 = vadd.f32 %v872, 1.0
    %v874 = vrcp.pop %v873
    %v875 = vmul.f32 1.0, %v874
    %877 = vrot.lane.b32.xlu0 %v779, 64
    %v878 = vpop.permute.xlu0 %877
    %v880 = vmul.f32 %v868, %v878
    %v881 = vmul.f32 %v868, %v869
    %883 = vrot.lane.b32.xlu0 %v881, 64
    %v884 = vpop.permute.xlu0 %883
    %v886 = vadd.f32 %v880, %v884
    %v887 = vtanh.pop %v886
    %v888 = vmul.f32 %v875, %v887
    %s889 = scalar_lea.vmem %s2, 4
    %v890 = vld [vmem:[%s889] sm:$0x1]
    %v892 = vlaneseq
    %v893 = vshrl.u32 %v892, 7
    %v894 = vsub.s32 0, %v893
    %v895 = vrot.slane %v890, %v894
    %vm897 = vcmp.gt.f32.partialorder %v379, %v895
    %899 = vrot.lane.b32.xlu0 %v888, 64
    %v900 = vpop.permute.xlu0 %899
    %v902 = vsel %vm897, %v900, %v774
    %904 = vrot.lane.b32.xlu0 %v886, 64
    %v905 = vpop.permute.xlu0 %904
    %v907 = vsel %vm897, %v905, %v779
    %v908 = vsel %vm897, %v900, 0.0
    %v909 = vmax.f32 %v781, %v908
    %s910 = smul.u32 5, 2
    %s911 = smul.addr %s910, 8
    %s912 = scalar_lea.vmem [#allocation2], %s911
    %v913 = vld [vmem:[%s912] sm:$0xff]
    %v914 = vld [vmem:[%s912 + $0x8] sm:$0xff]
    %v916 = vsel %vm101, %v902, 0
    %918 = vmatprep.subr.mxu0 %v257
    %919 = vmatpush1.msra.mxu0 %v256
    %920 = vmatprep.subr.mxu0 %v259
    %921 = vmatpush1.msra.mxu0 %v258
    %922 = vmatprep.subr.mxu0 %v261
    %923 = vmatpush1.msra.mxu0 %v260
    %924 = vmatprep.subr.mxu0 %v263
    %925 = vmatpush1.msra.mxu0 %v262
    %926 = vmatprep.subr.mxu0 %v265
    %927 = vmatpush1.msra.mxu0 %v264
    %928 = vmatprep.subr.mxu0 %v267
    %929 = vmatpush1.msra.mxu0 %v266
    %930 = vmatprep.subr.mxu0 %v269
    %931 = vmatpush1.msra.mxu0 %v268
    %932 = vmatprep.subr.mxu0 %v271
    %933 = vmatpush1.msra.mxu0 %v270
    %934 = vmatprep.subr.mxu0 0.0
    %935 = vmatpush1.msra.mxu0 0.0
    %936 = vmatprep.subr.mxu0 0.0
    %937 = vmatpush1.msra.mxu0 0.0
    %938 = vmatprep.subr.mxu0 0.0
    %939 = vmatpush1.msra.mxu0 0.0
    %940 = vmatprep.subr.mxu0 0.0
    %941 = vmatpush1.msra.mxu0 0.0
    %942 = vmatprep.subr.mxu0 0.0
    %943 = vmatpush1.msra.mxu0 0.0
    %944 = vmatprep.subr.mxu0 0.0
    %945 = vmatpush1.msra.mxu0 0.0
    %946 = vmatprep.subr.mxu0 0.0
    %947 = vmatpush1.msra.mxu0 0.0
    %948 = vmatprep.subr.mxu0 0.0
    %949 = vmatpush1.msra.mxu0 0.0
    %950 = vmatprep.subr.mxu0 0.0
    %951 = vmatpush1.msra.mxu0 0.0
    %952 = vmatprep.subr.mxu0 0.0
    %953 = vmatpush1.msra.mxu0 0.0
    %954 = vmatprep.subr.mxu0 0.0
    %955 = vmatpush1.msra.mxu0 0.0
    %956 = vmatprep.subr.mxu0 0.0
    %957 = vmatpush1.msra.mxu0 0.0
    %958 = vmatprep.subr.mxu0 0.0
    %959 = vmatpush1.msra.mxu0 0.0
    %960 = vmatprep.subr.mxu0 0.0
    %961 = vmatpush1.msra.mxu0 0.0
    %962 = vmatprep.subr.mxu0 0.0
    %963 = vmatpush1.msra.mxu0 0.0
    %964 = vmatprep.subr.mxu0 0.0
    %965 = vmatpush1.msra.mxu0 0.0
    %966 = vmatprep.subr.mxu0 0.0
    %967 = vmatpush1.msra.mxu0 0.0
    %968 = vmatprep.subr.mxu0 0.0
    %969 = vmatpush1.msra.mxu0 0.0
    %970 = vmatprep.subr.mxu0 0.0
    %971 = vmatpush1.msra.mxu0 0.0
    %972 = vmatprep.subr.mxu0 0.0
    %973 = vmatpush1.msra.mxu0 0.0
    %974 = vmatprep.subr.mxu0 0.0
    %975 = vmatpush1.msra.mxu0 0.0
    %976 = vmatprep.subr.mxu0 0.0
    %977 = vmatpush1.msra.mxu0 0.0
    %978 = vmatprep.subr.mxu0 0.0
    %979 = vmatpush1.msra.mxu0 0.0
    %980 = vmatprep.subr.mxu0 0.0
    %981 = vmatpush1.msra.mxu0 0.0
    %982 = vmatprep.mubr.f32.mxu0 0.0
    %983 = vmatmul.mubr.f32.gmra.mrb[0].mxu0 %v916
    %v984 = vpop.f32.mrb[0].mxu0
    %v985 = vadd.f32 0.0, %v984
    %v986 = vpop.f32.mrb[0].mxu0
    %v987 = vadd.f32 0.0, %v986
    %988 = vdwg.mxu0
    %v989 = vadd.f32 %v913, %v985
    %v990 = vadd.f32 %v914, %v987
    %v991 = vxor.u32 %v989, 2147483648
    %v992 = vmul.f32 %v991, 1.442695
    %v993 = vpow.pop %v992
    %v994 = vadd.f32 %v993, 1.0
    %v995 = vrcp.pop %v994
    %v996 = vmul.f32 1.0, %v995
    %v997 = vtanh.pop %v990
    %v998 = vxor.u32 %v990, 2147483648
    %v999 = vmul.f32 %v998, 1.442695
    %v1000 = vpow.pop %v999
    %v1001 = vadd.f32 %v1000, 1.0
    %v1002 = vrcp.pop %v1001
    %v1003 = vmul.f32 1.0, %v1002
    %1005 = vrot.lane.b32.xlu0 %v907, 64
    %v1006 = vpop.permute.xlu0 %1005
    %v1008 = vmul.f32 %v996, %v1006
    %v1009 = vmul.f32 %v996, %v997
    %1011 = vrot.lane.b32.xlu0 %v1009, 64
    %v1012 = vpop.permute.xlu0 %1011
    %v1014 = vadd.f32 %v1008, %v1012
    %v1015 = vtanh.pop %v1014
    %v1016 = vmul.f32 %v1003, %v1015
    %s1017 = scalar_lea.vmem %s2, 5
    %v1018 = vld [vmem:[%s1017] sm:$0x1]
    %v1020 = vlaneseq
    %v1021 = vshrl.u32 %v1020, 7
    %v1022 = vsub.s32 0, %v1021
    %v1023 = vrot.slane %v1018, %v1022
    %vm1025 = vcmp.gt.f32.partialorder %v379, %v1023
    %1027 = vrot.lane.b32.xlu0 %v1016, 64
    %v1028 = vpop.permute.xlu0 %1027
    %v1030 = vsel %vm1025, %v1028, %v902
    %1032 = vrot.lane.b32.xlu0 %v1014, 64
    %v1033 = vpop.permute.xlu0 %1032
    %v1035 = vsel %vm1025, %v1033, %v907
    %v1036 = vsel %vm1025, %v1028, 0.0
    %v1037 = vmax.f32 %v909, %v1036
    %s1038 = smul.u32 6, 2
    %s1039 = smul.addr %s1038, 8
    %s1040 = scalar_lea.vmem [#allocation2], %s1039
    %v1041 = vld [vmem:[%s1040] sm:$0xff]
    %v1042 = vld [vmem:[%s1040 + $0x8] sm:$0xff]
    %v1044 = vsel %vm101, %v1030, 0
    %1046 = vmatprep.subr.mxu0 %v257
    %1047 = vmatpush1.msra.mxu0 %v256
    %1048 = vmatprep.subr.mxu0 %v259
    %1049 = vmatpush1.msra.mxu0 %v258
    %1050 = vmatprep.subr.mxu0 %v261
    %1051 = vmatpush1.msra.mxu0 %v260
    %1052 = vmatprep.subr.mxu0 %v263
    %1053 = vmatpush1.msra.mxu0 %v262
    %1054 = vmatprep.subr.mxu0 %v265
    %1055 = vmatpush1.msra.mxu0 %v264
    %1056 = vmatprep.subr.mxu0 %v267
    %1057 = vmatpush1.msra.mxu0 %v266
    %1058 = vmatprep.subr.mxu0 %v269
    %1059 = vmatpush1.msra.mxu0 %v268
    %1060 = vmatprep.subr.mxu0 %v271
    %1061 = vmatpush1.msra.mxu0 %v270
    %1062 = vmatprep.subr.mxu0 0.0
    %1063 = vmatpush1.msra.mxu0 0.0
    %1064 = vmatprep.subr.mxu0 0.0
    %1065 = vmatpush1.msra.mxu0 0.0
    %1066 = vmatprep.subr.mxu0 0.0
    %1067 = vmatpush1.msra.mxu0 0.0
    %1068 = vmatprep.subr.mxu0 0.0
    %1069 = vmatpush1.msra.mxu0 0.0
    %1070 = vmatprep.subr.mxu0 0.0
    %1071 = vmatpush1.msra.mxu0 0.0
    %1072 = vmatprep.subr.mxu0 0.0
    %1073 = vmatpush1.msra.mxu0 0.0
    %1074 = vmatprep.subr.mxu0 0.0
    %1075 = vmatpush1.msra.mxu0 0.0
    %1076 = vmatprep.subr.mxu0 0.0
    %1077 = vmatpush1.msra.mxu0 0.0
    %1078 = vmatprep.subr.mxu0 0.0
    %1079 = vmatpush1.msra.mxu0 0.0
    %1080 = vmatprep.subr.mxu0 0.0
    %1081 = vmatpush1.msra.mxu0 0.0
    %1082 = vmatprep.subr.mxu0 0.0
    %1083 = vmatpush1.msra.mxu0 0.0
    %1084 = vmatprep.subr.mxu0 0.0
    %1085 = vmatpush1.msra.mxu0 0.0
    %1086 = vmatprep.subr.mxu0 0.0
    %1087 = vmatpush1.msra.mxu0 0.0
    %1088 = vmatprep.subr.mxu0 0.0
    %1089 = vmatpush1.msra.mxu0 0.0
    %1090 = vmatprep.subr.mxu0 0.0
    %1091 = vmatpush1.msra.mxu0 0.0
    %1092 = vmatprep.subr.mxu0 0.0
    %1093 = vmatpush1.msra.mxu0 0.0
    %1094 = vmatprep.subr.mxu0 0.0
    %1095 = vmatpush1.msra.mxu0 0.0
    %1096 = vmatprep.subr.mxu0 0.0
    %1097 = vmatpush1.msra.mxu0 0.0
    %1098 = vmatprep.subr.mxu0 0.0
    %1099 = vmatpush1.msra.mxu0 0.0
    %1100 = vmatprep.subr.mxu0 0.0
    %1101 = vmatpush1.msra.mxu0 0.0
    %1102 = vmatprep.subr.mxu0 0.0
    %1103 = vmatpush1.msra.mxu0 0.0
    %1104 = vmatprep.subr.mxu0 0.0
    %1105 = vmatpush1.msra.mxu0 0.0
    %1106 = vmatprep.subr.mxu0 0.0
    %1107 = vmatpush1.msra.mxu0 0.0
    %1108 = vmatprep.subr.mxu0 0.0
    %1109 = vmatpush1.msra.mxu0 0.0
    %1110 = vmatprep.mubr.f32.mxu0 0.0
    %1111 = vmatmul.mubr.f32.gmra.mrb[0].mxu0 %v1044
    %v1112 = vpop.f32.mrb[0].mxu0
    %v1113 = vadd.f32 0.0, %v1112
    %v1114 = vpop.f32.mrb[0].mxu0
    %v1115 = vadd.f32 0.0, %v1114
    %1116 = vdwg.mxu0
    %v1117 = vadd.f32 %v1041, %v1113
    %v1118 = vadd.f32 %v1042, %v1115
    %v1119 = vxor.u32 %v1117, 2147483648
    %v1120 = vmul.f32 %v1119, 1.442695
    %v1121 = vpow.pop %v1120
    %v1122 = vadd.f32 %v1121, 1.0
    %v1123 = vrcp.pop %v1122
    %v1124 = vmul.f32 1.0, %v1123
    %v1125 = vtanh.pop %v1118
    %v1126 = vxor.u32 %v1118, 2147483648
    %v1127 = vmul.f32 %v1126, 1.442695
    %v1128 = vpow.pop %v1127
    %v1129 = vadd.f32 %v1128, 1.0
    %v1130 = vrcp.pop %v1129
    %v1131 = vmul.f32 1.0, %v1130
    %1133 = vrot.lane.b32.xlu0 %v1035, 64
    %v1134 = vpop.permute.xlu0 %1133
    %v1136 = vmul.f32 %v1124, %v1134
    %v1137 = vmul.f32 %v1124, %v1125
    %1139 = vrot.lane.b32.xlu0 %v1137, 64
    %v1140 = vpop.permute.xlu0 %1139
    %v1142 = vadd.f32 %v1136, %v1140
    %v1143 = vtanh.pop %v1142
    %v1144 = vmul.f32 %v1131, %v1143
    %s1145 = scalar_lea.vmem %s2, 6
    %v1146 = vld [vmem:[%s1145] sm:$0x1]
    %v1148 = vlaneseq
    %v1149 = vshrl.u32 %v1148, 7
    %v1150 = vsub.s32 0, %v1149
    %v1151 = vrot.slane %v1146, %v1150
    %vm1153 = vcmp.gt.f32.partialorder %v379, %v1151
    %1155 = vrot.lane.b32.xlu0 %v1144, 64
    %v1156 = vpop.permute.xlu0 %1155
    %v1158 = vsel %vm1153, %v1156, %v1030
    %1160 = vrot.lane.b32.xlu0 %v1142, 64
    %v1161 = vpop.permute.xlu0 %1160
    %v1163 = vsel %vm1153, %v1161, %v1035
    %v1164 = vsel %vm1153, %v1156, 0.0
    %v1165 = vmax.f32 %v1037, %v1164
    %s1166 = smul.u32 7, 2
    %s1167 = smul.addr %s1166, 8
    %s1168 = scalar_lea.vmem [#allocation2], %s1167
    %v1169 = vld [vmem:[%s1168] sm:$0xff]
    %v1170 = vld [vmem:[%s1168 + $0x8] sm:$0xff]
    %v1172 = vsel %vm101, %v1158, 0
    %1174 = vmatprep.subr.mxu0 %v257
    %1175 = vmatpush1.msra.mxu0 %v256
    %1176 = vmatprep.subr.mxu0 %v259
    %1177 = vmatpush1.msra.mxu0 %v258
    %1178 = vmatprep.subr.mxu0 %v261
    %1179 = vmatpush1.msra.mxu0 %v260
    %1180 = vmatprep.subr.mxu0 %v263
    %1181 = vmatpush1.msra.mxu0 %v262
    %1182 = vmatprep.subr.mxu0 %v265
    %1183 = vmatpush1.msra.mxu0 %v264
    %1184 = vmatprep.subr.mxu0 %v267
    %1185 = vmatpush1.msra.mxu0 %v266
    %1186 = vmatprep.subr.mxu0 %v269
    %1187 = vmatpush1.msra.mxu0 %v268
    %1188 = vmatprep.subr.mxu0 %v271
    %1189 = vmatpush1.msra.mxu0 %v270
    %1190 = vmatprep.subr.mxu0 0.0
    %1191 = vmatpush1.msra.mxu0 0.0
    %1192 = vmatprep.subr.mxu0 0.0
    %1193 = vmatpush1.msra.mxu0 0.0
    %1194 = vmatprep.subr.mxu0 0.0
    %1195 = vmatpush1.msra.mxu0 0.0
    %1196 = vmatprep.subr.mxu0 0.0
    %1197 = vmatpush1.msra.mxu0 0.0
    %1198 = vmatprep.subr.mxu0 0.0
    %1199 = vmatpush1.msra.mxu0 0.0
    %1200 = vmatprep.subr.mxu0 0.0
    %1201 = vmatpush1.msra.mxu0 0.0
    %1202 = vmatprep.subr.mxu0 0.0
    %1203 = vmatpush1.msra.mxu0 0.0
    %1204 = vmatprep.subr.mxu0 0.0
    %1205 = vmatpush1.msra.mxu0 0.0
    %1206 = vmatprep.subr.mxu0 0.0
    %1207 = vmatpush1.msra.mxu0 0.0
    %1208 = vmatprep.subr.mxu0 0.0
    %1209 = vmatpush1.msra.mxu0 0.0
    %1210 = vmatprep.subr.mxu0 0.0
    %1211 = vmatpush1.msra.mxu0 0.0
    %1212 = vmatprep.subr.mxu0 0.0
    %1213 = vmatpush1.msra.mxu0 0.0
    %1214 = vmatprep.subr.mxu0 0.0
    %1215 = vmatpush1.msra.mxu0 0.0
    %1216 = vmatprep.subr.mxu0 0.0
    %1217 = vmatpush1.msra.mxu0 0.0
    %1218 = vmatprep.subr.mxu0 0.0
    %1219 = vmatpush1.msra.mxu0 0.0
    %1220 = vmatprep.subr.mxu0 0.0
    %1221 = vmatpush1.msra.mxu0 0.0
    %1222 = vmatprep.subr.mxu0 0.0
    %1223 = vmatpush1.msra.mxu0 0.0
    %1224 = vmatprep.subr.mxu0 0.0
    %1225 = vmatpush1.msra.mxu0 0.0
    %1226 = vmatprep.subr.mxu0 0.0
    %1227 = vmatpush1.msra.mxu0 0.0
    %1228 = vmatprep.subr.mxu0 0.0
    %1229 = vmatpush1.msra.mxu0 0.0
    %1230 = vmatprep.subr.mxu0 0.0
    %1231 = vmatpush1.msra.mxu0 0.0
    %1232 = vmatprep.subr.mxu0 0.0
    %1233 = vmatpush1.msra.mxu0 0.0
    %1234 = vmatprep.subr.mxu0 0.0
    %1235 = vmatpush1.msra.mxu0 0.0
    %1236 = vmatprep.subr.mxu0 0.0
    %1237 = vmatpush1.msra.mxu0 0.0
    %1238 = vmatprep.mubr.f32.mxu0 0.0
    %1239 = vmatmul.mubr.f32.gmra.mrb[0].mxu0 %v1172
    %v1240 = vpop.f32.mrb[0].mxu0
    %v1241 = vadd.f32 0.0, %v1240
    %v1242 = vpop.f32.mrb[0].mxu0
    %v1243 = vadd.f32 0.0, %v1242
    %1244 = vdwg.mxu0
    %v1245 = vadd.f32 %v1169, %v1241
    %v1246 = vadd.f32 %v1170, %v1243
    %v1247 = vxor.u32 %v1245, 2147483648
    %v1248 = vmul.f32 %v1247, 1.442695
    %v1249 = vpow.pop %v1248
    %v1250 = vadd.f32 %v1249, 1.0
    %v1251 = vrcp.pop %v1250
    %v1252 = vmul.f32 1.0, %v1251
    %v1253 = vtanh.pop %v1246
    %v1254 = vxor.u32 %v1246, 2147483648
    %v1255 = vmul.f32 %v1254, 1.442695
    %v1256 = vpow.pop %v1255
    %v1257 = vadd.f32 %v1256, 1.0
    %v1258 = vrcp.pop %v1257
    %v1259 = vmul.f32 1.0, %v1258
    %1261 = vrot.lane.b32.xlu0 %v1163, 64
    %v1262 = vpop.permute.xlu0 %1261
    %v1264 = vmul.f32 %v1252, %v1262
    %v1265 = vmul.f32 %v1252, %v1253
    %1267 = vrot.lane.b32.xlu0 %v1265, 64
    %v1268 = vpop.permute.xlu0 %1267
    %v1270 = vadd.f32 %v1264, %v1268
    %v1271 = vtanh.pop %v1270
    %v1272 = vmul.f32 %v1259, %v1271
    %s1273 = scalar_lea.vmem %s2, 7
    %v1274 = vld [vmem:[%s1273] sm:$0x1]
    %v1276 = vlaneseq
    %v1277 = vshrl.u32 %v1276, 7
    %v1278 = vsub.s32 0, %v1277
    %v1279 = vrot.slane %v1274, %v1278
    %vm1281 = vcmp.gt.f32.partialorder %v379, %v1279
    %1283 = vrot.lane.b32.xlu0 %v1272, 64
    %v1284 = vpop.permute.xlu0 %1283
    %v1286 = vsel %vm1281, %v1284, 0.0
    %v1287 = vmax.f32 %v1165, %v1286
    %1288 = vst.msk [vmem:[#allocation9] sm:$0xff] %vm101, %v1287
    // Predicated region
    $region38: #{tpu_custom_call.1} parent=1 // pred_check
      _
    $region39: #{tpu_custom_call.1} parent=1 // pred_check_branch
      %1290 = sbr.rel (0) target = $region41
    $region40: #{tpu_custom_call.1} parent=1 // pred_region
      %s1292 = ssub.s32 128, 128
      %1293 = vsyncadd [#allocation5], %s1292
      %s1295 = sshll.u32 [#allocation9], 4
      %s1296 = int_to_ptr.vmem [resolvable:$true] %s1295
      %1298 = dma.vmem_to_hbm [thread:$0]  %s1296, 128, %s6, [#allocation5]
    $region41: #{tpu_custom_call.1} parent=1 // pred_fallthru
      _
    // Predicated region
    $region42: #{tpu_custom_call.1} parent=1 // pred_check
      _
    $region43: #{tpu_custom_call.1} parent=1 // pred_check_branch
      %1300 = sbr.rel (0) target = $region45
    $region44: #{tpu_custom_call.1} parent=1 // pred_region
      %1301 = dma.done [#allocation5], 128
    $region45: #{tpu_custom_call.1} parent=1 // pred_fallthru
      _
    %1302 = vsyncpa [#allocation4], 1
    %1303 = vsyncpa [#allocation7], 1
    %1304 = vsyncpa [#allocation5], 1

</llo_original>
